<compile_context>
chip_gen: v7x
topology: tpu7x:2x2x1
jax: 0.10.0
libtpu: 0.0.40
codegen_flags: <defaults>
</compile_context>

<pallas_src>
import math

import jax
import jax.numpy as jnp
from jax import lax
from jax.experimental import pallas as pl
from jax.experimental.pallas import tpu as pltpu


# ----------------------------------------------------------------------------- helpers

def _round_up(x, m):
    return ((x + m - 1) // m) * m


def _vmem_capacity_bytes():
    """Physical VMEM per core; conservative 64 MiB (v7x) fallback if the query fails."""
    try:
        info = pltpu.get_tpu_info()
        for name in ("vmem_capacity_bytes", "vmem_size_bytes", "vmem_bytes"):
            v = getattr(info, name, None)
            if isinstance(v, int) and v > 0:
                return int(v)
    except Exception:
        pass
    return 64 * 1024 * 1024


def _pick_vmem_limit():
    cap = _vmem_capacity_bytes()
    limit = min(cap * 3 // 4, cap - (8 << 20))   # 128 MiB -> 96 MiB, 64 MiB -> 48 MiB
    return int(max(limit, 32 << 20))


def _pick_group(c, n, max_lanes=1024):
    """Rows packed per lane group so the packed last dim g*c is a multiple of 128."""
    if c % 128 == 0:
        return 1                                   # already lane-dense
    g = math.lcm(c, 128) // c
    if g * c > max_lanes or n % g != 0:
        return 1                                   # packing not applicable -> plain path
    for f in (8, 4, 2):                            # widen further for chunkier DMA / nicer dims
        if f * g * c <= max_lanes and n % (f * g) == 0:
            return f * g
    return g


def _choose_block_rows(n_rows, n_lanes, itemsize, vmem_limit):
    """Block height from the *padded* VMEM footprint.

    Budget ~ vmem_limit / 8 per block: 2x double-buffered input + 2x output blocks plus
    ~3 block-sized f32 intermediates inside the kernel body.
    """
    bytes_per_row = _round_up(n_lanes, 128) * max(int(itemsize), 4)   # intermediates are f32
    granule = 32                                   # multiple of the sublane tile for any dtype
    rows = (vmem_limit // 8) // bytes_per_row
    rows = max(granule, (rows // granule) * granule)
    rows = min(rows, _round_up(n_rows, granule))
    return int(rows)


# ----------------------------------------------------------------------------- kernels

def _make_kernel(g, c):
    inv_c = float(1.0 / c)
    eps = 1e-5

    if g == 1:
        # Plain path: one row per block row (C on lanes). Two-pass variance, all math f32.
        def kernel(x_ref, w_ref, o_ref):
            xf = x_ref[...].astype(jnp.float32)                       # (T, C)
            mean = jnp.sum(xf, axis=-1, keepdims=True) * inv_c
            xc = xf - mean
            var = jnp.sum(xc * xc, axis=-1, keepdims=True) * inv_c
            inv = lax.rsqrt(var + eps)
            w = w_ref[...].astype(jnp.float32)                        # (1, C)
            o_ref[...] = (xf * inv * w).astype(o_ref.dtype)
        return kernel

    # Packed path: g rows per block row, lanes = g*C (multiple of 128). Segmented
    # reductions / broadcasts over the C-wide lane groups go through the idle MXU.
    def kernel(x_ref, w_ref, a_ref, b_ref, o_ref):
        xf = x_ref[...].astype(jnp.float32)                           # (T, g*C)  lane-dense
        a = a_ref[...]                                                # (g*C, g)  segment indicator
        b = b_ref[...]                                                # (g, g*C)  its transpose
        # Two-pass moments per segment (per original row).
        mean = jnp.dot(xf, a, preferred_element_type=jnp.float32) * inv_c      # (T, g)
        mean_b = jnp.dot(mean, b, preferred_element_type=jnp.float32)          # (T, g*C)
        xc = xf - mean_b
        var = jnp.dot(xc * xc, a, preferred_element_type=jnp.float32) * inv_c  # (T, g)
        inv = lax.rsqrt(var + eps)                                              # (T, g)
        inv_b = jnp.dot(inv, b, preferred_element_type=jnp.float32)            # (T, g*C)
        w = w_ref[...].astype(jnp.float32)                                      # (1, g*C)
        o_ref[...] = (xf * inv_b * w).astype(o_ref.dtype)                       # note: x, not x-mean
    return kernel


# ----------------------------------------------------------------------------- pallas wrapper

def _layernorm_pallas(x2, weight, g):
    """x2: (N, C); weight: (C,). Normalizes each row; returns (N, C)."""
    n, c = x2.shape
    vmem_limit = _pick_vmem_limit()

    if g > 1:
        l = g * c
        rows = n // g
        xv = x2.reshape(rows, l)                                   # free row-major reshape
        wv = jnp.tile(weight.reshape(1, c), (1, g))                # (1, g*C), w[j % C]
        lane_seg = jnp.arange(l, dtype=jnp.int32) // c             # segment id of each lane
        seg_ids = jnp.arange(g, dtype=jnp.int32)
        a_mat = (lane_seg[:, None] == seg_ids[None, :]).astype(jnp.float32)   # (g*C, g)
        b_mat = (seg_ids[:, None] == lane_seg[None, :]).astype(jnp.float32)   # (g, g*C)
        extra_inputs = (a_mat, b_mat)
        extra_specs = [
            pl.BlockSpec((l, g), lambda i: (0, 0)),
            pl.BlockSpec((g, l), lambda i: (0, 0)),
        ]
    else:
        l = c
        rows = n
        xv = x2
        wv = weight.reshape(1, c)
        extra_inputs = ()
        extra_specs = []

    tile = _choose_block_rows(rows, l, xv.dtype.itemsize, vmem_limit)
    grid = (pl.cdiv(rows, tile),)

    itemsize = xv.dtype.itemsize
    cost = pl.CostEstimate(
        flops=10 * n * c,                       # reductions + elementwise (advisory)
        transcendentals=n,                      # one rsqrt per row
        bytes_accessed=2 * n * c * itemsize + c * weight.dtype.itemsize,
    )

    out = pl.pallas_call(
        _make_kernel(g, c),
        out_shape=jax.ShapeDtypeStruct((rows, l), x2.dtype),
        grid_spec=pltpu.PrefetchScalarGridSpec(
            num_scalar_prefetch=0,
            grid=grid,
            in_specs=[
                pl.BlockSpec((tile, l), lambda i: (i, 0)),
                pl.BlockSpec((1, l), lambda i: (0, 0)),
                *extra_specs,
            ],
            out_specs=pl.BlockSpec((tile, l), lambda i: (i, 0)),
        ),
        compiler_params=pltpu.CompilerParams(
            dimension_semantics=("parallel",),       # row blocks are independent
            vmem_limit_bytes=vmem_limit,
        ),
        cost_estimate=cost,
    )(xv, wv, *extra_inputs)

    return out.reshape(n, c)


def _reference(x, weight):
    xf = x.astype(jnp.float32)
    var = jnp.var(xf, axis=-1, keepdims=True)                     # biased (unbiased=False)
    return (xf / jnp.sqrt(var + 1e-5) * weight.astype(jnp.float32)).astype(x.dtype)


_PACKED_OK = {}


def _packed_path_ok(c, g, dtype):
    """One-time tiny probe: does the packed (MXU segmented-reduce) path lower and stay accurate
    on this TPU?  Cached per (C, g, dtype); any failure -> plain path."""
    key = (int(c), int(g), str(dtype))
    cached = _PACKED_OK.get(key)
    if cached is not None:
        return cached
    ok = False
    try:
        k1, k2 = jax.random.split(jax.random.PRNGKey(42))
        rows = 32 * g
        xs = (jax.random.normal(k1, (rows, c), dtype=jnp.float32) * 1.7 + 3.0).astype(dtype)
        ws = jax.random.uniform(k2, (c,), dtype=jnp.float32, minval=0.5, maxval=1.5)
        got = jax.block_until_ready(_layernorm_pallas(xs, ws, g))
        want = _reference(xs, ws)
        tol = 3e-4 if jnp.dtype(dtype).itemsize >= 4 else 2e-2
        ok = bool(jnp.allclose(got.astype(jnp.float32), want.astype(jnp.float32),
                               atol=tol, rtol=tol))
    except Exception:
        ok = False
    _PACKED_OK[key] = ok
    return ok


def biasfree_layernorm(x, weight):
    """x: (..., C); weight: (C,). Returns the same shape/dtype as x."""
    orig_shape = x.shape
    c = int(orig_shape[-1])
    n = 1
    for d in orig_shape[:-1]:
        n *= int(d)
    x2 = x.reshape(n, c)

    g = _pick_group(c, n)
    if g > 1 and _packed_path_ok(c, g, x2.dtype):
        try:
            return _layernorm_pallas(x2, weight, g).reshape(orig_shape)
        except Exception:
            pass  # fall back to the plain path below
    return _layernorm_pallas(x2, weight, 1).reshape(orig_shape)


# ----------------------------------------------------------------------------- self-test

if __name__ == "__main__":
    key = jax.random.PRNGKey(0)
    kx, kw = jax.random.split(key)

    # Restormer rearranges (B, C, H, W) -> (B, H*W, C) before LayerNorm.
    B, H, W, C = 2, 16, 16, 32
    x = jax.random.normal(kx, (B, H * W, C), dtype=jnp.float32)
    weight = jax.random.uniform(kw, (C,), dtype=jnp.float32, minval=0.5, maxval=1.5)

    y = jax.block_until_ready(biasfree_layernorm(x, weight))
    y_ref = _reference(x, weight)
    assert y.shape == x.shape and y.dtype == x.dtype
    assert jnp.allclose(y, y_ref, atol=3e-4, rtol=3e-4), "mismatch vs reference"

    # Large-mean-offset input: exercises the two-pass variance robustness.
    x_off = x * 3.0 + 5.0
    y2 = jax.block_until_ready(biasfree_layernorm(x_off, weight))
    y2_ref = _reference(x_off, weight)
    assert jnp.allclose(y2, y2_ref, atol=3e-4, rtol=3e-4), "mismatch vs reference (offset)"

    print("KERNEL_OK")
</pallas_src>

<mosaic_0001>
module attributes {stable_mosaic.version = 11 : i64} {
  func.func @kernel(%arg0: i32, %arg1: memref<32x1024xf32, #tpu.memory_space<vmem>>, %arg2: memref<1x1024xf32, #tpu.memory_space<vmem>>, %arg3: memref<1024x32xf32, #tpu.memory_space<vmem>>, %arg4: memref<32x1024xf32, #tpu.memory_space<vmem>>, %arg5: memref<32x1024xf32, #tpu.memory_space<vmem>>) attributes {dimension_semantics = [#tpu.dimension_semantics<parallel>], iteration_bounds = array<i64: 1>, scalar_prefetch = 0 : i64, scratch_operands = 0 : i64, tpu.core_type = #tpu.core_type<tc>, window_params = [{transform_indices = @transform_0, window_bounds = array<i64: 32, 1024>}, {pipeline_mode = #tpu.pipeline_mode<synchronous>, transform_indices = @transform_1, window_bounds = array<i64: 1, 1024>}, {pipeline_mode = #tpu.pipeline_mode<synchronous>, transform_indices = @transform_2, window_bounds = array<i64: 1024, 32>}, {pipeline_mode = #tpu.pipeline_mode<synchronous>, transform_indices = @transform_3, window_bounds = array<i64: 32, 1024>}, {transform_indices = @transform_4, window_bounds = array<i64: 32, 1024>}]} {
    %c0 = arith.constant 0 : index
    %c0_0 = arith.constant 0 : index
    %0 = vector.load %arg1[%c0, %c0_0] : memref<32x1024xf32, #tpu.memory_space<vmem>>, vector<32x1024xf32>
    %c0_1 = arith.constant 0 : index
    %c0_2 = arith.constant 0 : index
    %1 = vector.load %arg3[%c0_1, %c0_2] : memref<1024x32xf32, #tpu.memory_space<vmem>>, vector<1024x32xf32>
    %c0_3 = arith.constant 0 : index
    %c0_4 = arith.constant 0 : index
    %2 = vector.load %arg4[%c0_3, %c0_4] : memref<32x1024xf32, #tpu.memory_space<vmem>>, vector<32x1024xf32>
    %cst = arith.constant dense<0.000000e+00> : vector<32x32xf32>
    %3 = tpu.matmul %0, %1, %cst {dimension_numbers = #tpu.dot_dimension_numbers<[1], [0], [0], [1], [0, 0, 1, 1], [], []>} : vector<32x1024xf32>, vector<1024x32xf32>, vector<32x32xf32> -> vector<32x32xf32>
    %cst_5 = arith.constant 3.125000e-02 : f32
    %4 = vector.broadcast %cst_5 : f32 to vector<32x32xf32>
    %5 = arith.mulf %3, %4 : vector<32x32xf32>
    %cst_6 = arith.constant dense<0.000000e+00> : vector<32x1024xf32>
    %6 = tpu.matmul %5, %2, %cst_6 {dimension_numbers = #tpu.dot_dimension_numbers<[1], [0], [0], [1], [0, 0, 1, 1], [], []>} : vector<32x32xf32>, vector<32x1024xf32>, vector<32x1024xf32> -> vector<32x1024xf32>
    %7 = arith.subf %0, %6 : vector<32x1024xf32>
    %8 = arith.mulf %7, %7 : vector<32x1024xf32>
    %cst_7 = arith.constant dense<0.000000e+00> : vector<32x32xf32>
    %9 = tpu.matmul %8, %1, %cst_7 {dimension_numbers = #tpu.dot_dimension_numbers<[1], [0], [0], [1], [0, 0, 1, 1], [], []>} : vector<32x1024xf32>, vector<1024x32xf32>, vector<32x32xf32> -> vector<32x32xf32>
    %cst_8 = arith.constant 3.125000e-02 : f32
    %10 = vector.broadcast %cst_8 : f32 to vector<32x32xf32>
    %11 = arith.mulf %9, %10 : vector<32x32xf32>
    %cst_9 = arith.constant 9.99999974E-6 : f32
    %12 = vector.broadcast %cst_9 : f32 to vector<32x32xf32>
    %13 = arith.addf %11, %12 : vector<32x32xf32>
    %14 = math.rsqrt %13 : vector<32x32xf32>
    %cst_10 = arith.constant dense<0.000000e+00> : vector<32x1024xf32>
    %15 = tpu.matmul %14, %2, %cst_10 {dimension_numbers = #tpu.dot_dimension_numbers<[1], [0], [0], [1], [0, 0, 1, 1], [], []>} : vector<32x32xf32>, vector<32x1024xf32>, vector<32x1024xf32> -> vector<32x1024xf32>
    %c0_11 = arith.constant 0 : index
    %c0_12 = arith.constant 0 : index
    %16 = vector.load %arg2[%c0_11, %c0_12] : memref<1x1024xf32, #tpu.memory_space<vmem>>, vector<1x1024xf32>
    %17 = arith.mulf %0, %15 : vector<32x1024xf32>
    %18 = vector.broadcast %16 : vector<1x1024xf32> to vector<32x1024xf32>
    %19 = arith.mulf %17, %18 : vector<32x1024xf32>
    %c0_13 = arith.constant 0 : index
    %c0_14 = arith.constant 0 : index
    %20 = vector.load %arg5[%c0_13, %c0_14] : memref<32x1024xf32, #tpu.memory_space<vmem>>, vector<32x1024xf32>
    tpu.vector_store %arg5[%c0_13, %c0_14], %19 {strides = array<i32>} : memref<32x1024xf32, #tpu.memory_space<vmem>>, vector<32x1024xf32>,
    return
  }
  func.func @transform_0(%arg0: i32) -> (i32, i32) {
    %c0_i32 = arith.constant 0 : i32
    %c0_i32_0 = arith.constant 0 : i32
    return %arg0, %c0_i32 : i32, i32
  }
  func.func @transform_1(%arg0: i32) -> (i32, i32) {
    %c0_i32 = arith.constant 0 : i32
    %c0_i32_0 = arith.constant 0 : i32
    %c0_i32_1 = arith.constant 0 : i32
    return %c0_i32, %c0_i32_0 : i32, i32
  }
  func.func @transform_2(%arg0: i32) -> (i32, i32) {
    %c0_i32 = arith.constant 0 : i32
    %c0_i32_0 = arith.constant 0 : i32
    %c0_i32_1 = arith.constant 0 : i32
    return %c0_i32, %c0_i32_0 : i32, i32
  }
  func.func @transform_3(%arg0: i32) -> (i32, i32) {
    %c0_i32 = arith.constant 0 : i32
    %c0_i32_0 = arith.constant 0 : i32
    %c0_i32_1 = arith.constant 0 : i32
    return %c0_i32, %c0_i32_0 : i32, i32
  }
  func.func @transform_4(%arg0: i32) -> (i32, i32) {
    %c0_i32 = arith.constant 0 : i32
    %c0_i32_0 = arith.constant 0 : i32
    return %arg0, %c0_i32 : i32, i32
  }
}

module attributes {stable_mosaic.version = 11 : i64} {
  func.func @kernel(%arg0: i32, %arg1: memref<512x32xf32, #tpu.memory_space<vmem>>, %arg2: memref<1x32xf32, #tpu.memory_space<vmem>>, %arg3: memref<512x32xf32, #tpu.memory_space<vmem>>) attributes {dimension_semantics = [#tpu.dimension_semantics<parallel>], iteration_bounds = array<i64: 1>, scalar_prefetch = 0 : i64, scratch_operands = 0 : i64, tpu.core_type = #tpu.core_type<tc>, window_params = [{transform_indices = @transform_0, window_bounds = array<i64: 512, 32>}, {pipeline_mode = #tpu.pipeline_mode<synchronous>, transform_indices = @transform_1, window_bounds = array<i64: 1, 32>}, {transform_indices = @transform_2, window_bounds = array<i64: 512, 32>}]} {
    %c0 = arith.constant 0 : index
    %c0_0 = arith.constant 0 : index
    %0 = vector.load %arg1[%c0, %c0_0] : memref<512x32xf32, #tpu.memory_space<vmem>>, vector<512x32xf32>
    %cst = arith.constant dense<0.000000e+00> : vector<512xf32>
    %1 = vector.multi_reduction <add>, %0, %cst [1] : vector<512x32xf32> to vector<512xf32>
    %2 = vector.shape_cast %1 : vector<512xf32> to vector<512x1xf32>
    %cst_1 = arith.constant 3.125000e-02 : f32
    %3 = vector.broadcast %cst_1 : f32 to vector<512x1xf32>
    %4 = arith.mulf %2, %3 : vector<512x1xf32>
    %5 = vector.broadcast %4 : vector<512x1xf32> to vector<512x32xf32>
    %6 = arith.subf %0, %5 : vector<512x32xf32>
    %7 = arith.mulf %6, %6 : vector<512x32xf32>
    %cst_2 = arith.constant dense<0.000000e+00> : vector<512xf32>
    %8 = vector.multi_reduction <add>, %7, %cst_2 [1] : vector<512x32xf32> to vector<512xf32>
    %9 = vector.shape_cast %8 : vector<512xf32> to vector<512x1xf32>
    %cst_3 = arith.constant 3.125000e-02 : f32
    %10 = vector.broadcast %cst_3 : f32 to vector<512x1xf32>
    %11 = arith.mulf %9, %10 : vector<512x1xf32>
    %cst_4 = arith.constant 9.99999974E-6 : f32
    %12 = vector.broadcast %cst_4 : f32 to vector<512x1xf32>
    %13 = arith.addf %11, %12 : vector<512x1xf32>
    %14 = math.rsqrt %13 : vector<512x1xf32>
    %c0_5 = arith.constant 0 : index
    %c0_6 = arith.constant 0 : index
    %15 = vector.load %arg2[%c0_5, %c0_6] : memref<1x32xf32, #tpu.memory_space<vmem>>, vector<1x32xf32>
    %16 = vector.broadcast %14 : vector<512x1xf32> to vector<512x32xf32>
    %17 = arith.mulf %0, %16 : vector<512x32xf32>
    %18 = vector.broadcast %15 : vector<1x32xf32> to vector<512x32xf32>
    %19 = arith.mulf %17, %18 : vector<512x32xf32>
    %c0_7 = arith.constant 0 : index
    %c0_8 = arith.constant 0 : index
    %20 = vector.load %arg3[%c0_7, %c0_8] : memref<512x32xf32, #tpu.memory_space<vmem>>, vector<512x32xf32>
    tpu.vector_store %arg3[%c0_7, %c0_8], %19 {strides = array<i32>} : memref<512x32xf32, #tpu.memory_space<vmem>>, vector<512x32xf32>,
    return
  }
  func.func @transform_0(%arg0: i32) -> (i32, i32) {
    %c0_i32 = arith.constant 0 : i32
    %c0_i32_0 = arith.constant 0 : i32
    return %arg0, %c0_i32 : i32, i32
  }
  func.func @transform_1(%arg0: i32) -> (i32, i32) {
    %c0_i32 = arith.constant 0 : i32
    %c0_i32_0 = arith.constant 0 : i32
    %c0_i32_1 = arith.constant 0 : i32
    return %c0_i32, %c0_i32_0 : i32, i32
  }
  func.func @transform_2(%arg0: i32) -> (i32, i32) {
    %c0_i32 = arith.constant 0 : i32
    %c0_i32_0 = arith.constant 0 : i32
    return %arg0, %c0_i32 : i32, i32
  }
}

</mosaic_0001>

<llo_original>
// kernel: tpu_custom_call.1
$region0: #{tpu_custom_call.1}
  #allocation0 [shape = 'u32[]', space=smem, size = 0x4, offset = 0x4, fixed_abs, tag = 'smem constant byte address 0x4 - core index']
  #allocation1 [shape = 'u32[144,128]{1,0:T(1,128)}', space=vmem, size = 0x12000, scoped, tag = 'internal scratch']
  %s0 = inlined_call_operand.vmem [shape: f32[32,1024], index: 0, kind: input, shape index: {}]
  %s1 = inlined_call_operand.vmem [shape: f32[1,1024], index: 1, kind: input, shape index: {}]
  %s2 = inlined_call_operand.vmem [shape: f32[1024,32], index: 2, kind: input, shape index: {}]
  %s3 = inlined_call_operand.vmem [shape: f32[32,1024], index: 3, kind: input, shape index: {}]
  %s4 = inlined_call_operand.hbm [shape: f32[32,1024], index: 4, kind: output, shape index: {}]
  %s5 = sld [smem:[#allocation0]]
  $region26: #{tpu_custom_call.1} parent=0
    _
  %s7 = ssub.s32 1, %s5
  %s8 = scalar_select 0, %s7, %s5
  $region1: #{tpu_custom_call.1} parent=0
    #allocation2 [shape = 'u8[131072]{0}', space=vmem, size = 0x20000, scoped, tag = 'output window, operand 0, single buffered']
    #allocation3 [shape = 's32[1]{0}', space=sflag, size = 0x4, scoped, tag = 'scoped memory for tpu_custom_call.1']
    %9 = vsyncpa [#allocation3], 0
    // Predicated region
    $region2: #{tpu_custom_call.1} parent=1 // pred_check
      _
    $region3: #{tpu_custom_call.1} parent=1 // pred_check_branch
      %11 = sbr.rel (0) target = $region5
    $region4: #{tpu_custom_call.1} parent=1 // pred_region
      _
    $region5: #{tpu_custom_call.1} parent=1 // pred_fallthru
      _
    // Predicated region
    $region6: #{tpu_custom_call.1} parent=1 // pred_check
      _
    $region7: #{tpu_custom_call.1} parent=1 // pred_check_branch
      %13 = sbr.rel (0) target = $region9
    $region8: #{tpu_custom_call.1} parent=1 // pred_region
      _
    $region9: #{tpu_custom_call.1} parent=1 // pred_fallthru
      _
    // Predicated region
    $region10: #{tpu_custom_call.1} parent=1 // pred_check
      _
    $region11: #{tpu_custom_call.1} parent=1 // pred_check_branch
      %15 = sbr.rel (0) target = $region13
    $region12: #{tpu_custom_call.1} parent=1 // pred_region
      _
    $region13: #{tpu_custom_call.1} parent=1 // pred_fallthru
      _
    // Predicated region
    $region14: #{tpu_custom_call.1} parent=1 // pred_check
      _
    $region15: #{tpu_custom_call.1} parent=1 // pred_check_branch
      %17 = sbr.rel (0) target = $region17
    $region16: #{tpu_custom_call.1} parent=1 // pred_region
      _
    $region17: #{tpu_custom_call.1} parent=1 // pred_fallthru
      _
    %v18 = vld [vmem:[%s0] sm:$0xff]
    %v19 = vld [vmem:[%s0 + $0x8] sm:$0xff]
    %v20 = vld [vmem:[%s0 + $0x10] sm:$0xff]
    %v21 = vld [vmem:[%s0 + $0x18] sm:$0xff]
    %v22 = vld [vmem:[%s0 + $0x20] sm:$0xff]
    %v23 = vld [vmem:[%s0 + $0x28] sm:$0xff]
    %v24 = vld [vmem:[%s0 + $0x30] sm:$0xff]
    %v25 = vld [vmem:[%s0 + $0x38] sm:$0xff]
    %v26 = vld [vmem:[%s0 + $0x40] sm:$0xff]
    %v27 = vld [vmem:[%s0 + $0x48] sm:$0xff]
    %v28 = vld [vmem:[%s0 + $0x50] sm:$0xff]
    %v29 = vld [vmem:[%s0 + $0x58] sm:$0xff]
    %v30 = vld [vmem:[%s0 + $0x60] sm:$0xff]
    %v31 = vld [vmem:[%s0 + $0x68] sm:$0xff]
    %v32 = vld [vmem:[%s0 + $0x70] sm:$0xff]
    %v33 = vld [vmem:[%s0 + $0x78] sm:$0xff]
    %v34 = vld [vmem:[%s0 + $0x80] sm:$0xff]
    %v35 = vld [vmem:[%s0 + $0x88] sm:$0xff]
    %v36 = vld [vmem:[%s0 + $0x90] sm:$0xff]
    %v37 = vld [vmem:[%s0 + $0x98] sm:$0xff]
    %v38 = vld [vmem:[%s0 + $0xa0] sm:$0xff]
    %v39 = vld [vmem:[%s0 + $0xa8] sm:$0xff]
    %v40 = vld [vmem:[%s0 + $0xb0] sm:$0xff]
    %v41 = vld [vmem:[%s0 + $0xb8] sm:$0xff]
    %v42 = vld [vmem:[%s0 + $0xc0] sm:$0xff]
    %v43 = vld [vmem:[%s0 + $0xc8] sm:$0xff]
    %v44 = vld [vmem:[%s0 + $0xd0] sm:$0xff]
    %v45 = vld [vmem:[%s0 + $0xd8] sm:$0xff]
    %v46 = vld [vmem:[%s0 + $0xe0] sm:$0xff]
    %v47 = vld [vmem:[%s0 + $0xe8] sm:$0xff]
    %v48 = vld [vmem:[%s0 + $0xf0] sm:$0xff]
    %v49 = vld [vmem:[%s0 + $0xf8] sm:$0xff]
    %v50 = vld [vmem:[%s2] sm:$0xff]
    %v51 = vld [vmem:[%s2 + $0x8] sm:$0xff]
    %v52 = vld [vmem:[%s2 + $0x10] sm:$0xff]
    %v53 = vld [vmem:[%s2 + $0x18] sm:$0xff]
    %v54 = vld [vmem:[%s2 + $0x20] sm:$0xff]
    %v55 = vld [vmem:[%s2 + $0x28] sm:$0xff]
    %v56 = vld [vmem:[%s2 + $0x30] sm:$0xff]
    %v57 = vld [vmem:[%s2 + $0x38] sm:$0xff]
    %v58 = vld [vmem:[%s2 + $0x40] sm:$0xff]
    %v59 = vld [vmem:[%s2 + $0x48] sm:$0xff]
    %v60 = vld [vmem:[%s2 + $0x50] sm:$0xff]
    %v61 = vld [vmem:[%s2 + $0x58] sm:$0xff]
    %v62 = vld [vmem:[%s2 + $0x60] sm:$0xff]
    %v63 = vld [vmem:[%s2 + $0x68] sm:$0xff]
    %v64 = vld [vmem:[%s2 + $0x70] sm:$0xff]
    %v65 = vld [vmem:[%s2 + $0x78] sm:$0xff]
    %v66 = vld [vmem:[%s2 + $0x80] sm:$0xff]
    %v67 = vld [vmem:[%s2 + $0x88] sm:$0xff]
    %v68 = vld [vmem:[%s2 + $0x90] sm:$0xff]
    %v69 = vld [vmem:[%s2 + $0x98] sm:$0xff]
    %v70 = vld [vmem:[%s2 + $0xa0] sm:$0xff]
    %v71 = vld [vmem:[%s2 + $0xa8] sm:$0xff]
    %v72 = vld [vmem:[%s2 + $0xb0] sm:$0xff]
    %v73 = vld [vmem:[%s2 + $0xb8] sm:$0xff]
    %v74 = vld [vmem:[%s2 + $0xc0] sm:$0xff]
    %v75 = vld [vmem:[%s2 + $0xc8] sm:$0xff]
    %v76 = vld [vmem:[%s2 + $0xd0] sm:$0xff]
    %v77 = vld [vmem:[%s2 + $0xd8] sm:$0xff]
    %v78 = vld [vmem:[%s2 + $0xe0] sm:$0xff]
    %v79 = vld [vmem:[%s2 + $0xe8] sm:$0xff]
    %v80 = vld [vmem:[%s2 + $0xf0] sm:$0xff]
    %v81 = vld [vmem:[%s2 + $0xf8] sm:$0xff]
    %v82 = vld [vmem:[%s2 + $0x100] sm:$0xff]
    %v83 = vld [vmem:[%s2 + $0x108] sm:$0xff]
    %v84 = vld [vmem:[%s2 + $0x110] sm:$0xff]
    %v85 = vld [vmem:[%s2 + $0x118] sm:$0xff]
    %v86 = vld [vmem:[%s2 + $0x120] sm:$0xff]
    %v87 = vld [vmem:[%s2 + $0x128] sm:$0xff]
    %v88 = vld [vmem:[%s2 + $0x130] sm:$0xff]
    %v89 = vld [vmem:[%s2 + $0x138] sm:$0xff]
    %v90 = vld [vmem:[%s2 + $0x140] sm:$0xff]
    %v91 = vld [vmem:[%s2 + $0x148] sm:$0xff]
    %v92 = vld [vmem:[%s2 + $0x150] sm:$0xff]
    %v93 = vld [vmem:[%s2 + $0x158] sm:$0xff]
    %v94 = vld [vmem:[%s2 + $0x160] sm:$0xff]
    %v95 = vld [vmem:[%s2 + $0x168] sm:$0xff]
    %v96 = vld [vmem:[%s2 + $0x170] sm:$0xff]
    %v97 = vld [vmem:[%s2 + $0x178] sm:$0xff]
    %v98 = vld [vmem:[%s2 + $0x180] sm:$0xff]
    %v99 = vld [vmem:[%s2 + $0x188] sm:$0xff]
    %v100 = vld [vmem:[%s2 + $0x190] sm:$0xff]
    %v101 = vld [vmem:[%s2 + $0x198] sm:$0xff]
    %v102 = vld [vmem:[%s2 + $0x1a0] sm:$0xff]
    %v103 = vld [vmem:[%s2 + $0x1a8] sm:$0xff]
    %v104 = vld [vmem:[%s2 + $0x1b0] sm:$0xff]
    %v105 = vld [vmem:[%s2 + $0x1b8] sm:$0xff]
    %v106 = vld [vmem:[%s2 + $0x1c0] sm:$0xff]
    %v107 = vld [vmem:[%s2 + $0x1c8] sm:$0xff]
    %v108 = vld [vmem:[%s2 + $0x1d0] sm:$0xff]
    %v109 = vld [vmem:[%s2 + $0x1d8] sm:$0xff]
    %v110 = vld [vmem:[%s2 + $0x1e0] sm:$0xff]
    %v111 = vld [vmem:[%s2 + $0x1e8] sm:$0xff]
    %v112 = vld [vmem:[%s2 + $0x1f0] sm:$0xff]
    %v113 = vld [vmem:[%s2 + $0x1f8] sm:$0xff]
    %v114 = vld [vmem:[%s2 + $0x200] sm:$0xff]
    %v115 = vld [vmem:[%s2 + $0x208] sm:$0xff]
    %v116 = vld [vmem:[%s2 + $0x210] sm:$0xff]
    %v117 = vld [vmem:[%s2 + $0x218] sm:$0xff]
    %v118 = vld [vmem:[%s2 + $0x220] sm:$0xff]
    %v119 = vld [vmem:[%s2 + $0x228] sm:$0xff]
    %v120 = vld [vmem:[%s2 + $0x230] sm:$0xff]
    %v121 = vld [vmem:[%s2 + $0x238] sm:$0xff]
    %v122 = vld [vmem:[%s2 + $0x240] sm:$0xff]
    %v123 = vld [vmem:[%s2 + $0x248] sm:$0xff]
    %v124 = vld [vmem:[%s2 + $0x250] sm:$0xff]
    %v125 = vld [vmem:[%s2 + $0x258] sm:$0xff]
    %v126 = vld [vmem:[%s2 + $0x260] sm:$0xff]
    %v127 = vld [vmem:[%s2 + $0x268] sm:$0xff]
    %v128 = vld [vmem:[%s2 + $0x270] sm:$0xff]
    %v129 = vld [vmem:[%s2 + $0x278] sm:$0xff]
    %v130 = vld [vmem:[%s2 + $0x280] sm:$0xff]
    %v131 = vld [vmem:[%s2 + $0x288] sm:$0xff]
    %v132 = vld [vmem:[%s2 + $0x290] sm:$0xff]
    %v133 = vld [vmem:[%s2 + $0x298] sm:$0xff]
    %v134 = vld [vmem:[%s2 + $0x2a0] sm:$0xff]
    %v135 = vld [vmem:[%s2 + $0x2a8] sm:$0xff]
    %v136 = vld [vmem:[%s2 + $0x2b0] sm:$0xff]
    %v137 = vld [vmem:[%s2 + $0x2b8] sm:$0xff]
    %v138 = vld [vmem:[%s2 + $0x2c0] sm:$0xff]
    %v139 = vld [vmem:[%s2 + $0x2c8] sm:$0xff]
    %v140 = vld [vmem:[%s2 + $0x2d0] sm:$0xff]
    %v141 = vld [vmem:[%s2 + $0x2d8] sm:$0xff]
    %v142 = vld [vmem:[%s2 + $0x2e0] sm:$0xff]
    %v143 = vld [vmem:[%s2 + $0x2e8] sm:$0xff]
    %v144 = vld [vmem:[%s2 + $0x2f0] sm:$0xff]
    %v145 = vld [vmem:[%s2 + $0x2f8] sm:$0xff]
    %v146 = vld [vmem:[%s2 + $0x300] sm:$0xff]
    %v147 = vld [vmem:[%s2 + $0x308] sm:$0xff]
    %v148 = vld [vmem:[%s2 + $0x310] sm:$0xff]
    %v149 = vld [vmem:[%s2 + $0x318] sm:$0xff]
    %v150 = vld [vmem:[%s2 + $0x320] sm:$0xff]
    %v151 = vld [vmem:[%s2 + $0x328] sm:$0xff]
    %v152 = vld [vmem:[%s2 + $0x330] sm:$0xff]
    %v153 = vld [vmem:[%s2 + $0x338] sm:$0xff]
    %v154 = vld [vmem:[%s2 + $0x340] sm:$0xff]
    %v155 = vld [vmem:[%s2 + $0x348] sm:$0xff]
    %v156 = vld [vmem:[%s2 + $0x350] sm:$0xff]
    %v157 = vld [vmem:[%s2 + $0x358] sm:$0xff]
    %v158 = vld [vmem:[%s2 + $0x360] sm:$0xff]
    %v159 = vld [vmem:[%s2 + $0x368] sm:$0xff]
    %v160 = vld [vmem:[%s2 + $0x370] sm:$0xff]
    %v161 = vld [vmem:[%s2 + $0x378] sm:$0xff]
    %v162 = vld [vmem:[%s2 + $0x380] sm:$0xff]
    %v163 = vld [vmem:[%s2 + $0x388] sm:$0xff]
    %v164 = vld [vmem:[%s2 + $0x390] sm:$0xff]
    %v165 = vld [vmem:[%s2 + $0x398] sm:$0xff]
    %v166 = vld [vmem:[%s2 + $0x3a0] sm:$0xff]
    %v167 = vld [vmem:[%s2 + $0x3a8] sm:$0xff]
    %v168 = vld [vmem:[%s2 + $0x3b0] sm:$0xff]
    %v169 = vld [vmem:[%s2 + $0x3b8] sm:$0xff]
    %v170 = vld [vmem:[%s2 + $0x3c0] sm:$0xff]
    %v171 = vld [vmem:[%s2 + $0x3c8] sm:$0xff]
    %v172 = vld [vmem:[%s2 + $0x3d0] sm:$0xff]
    %v173 = vld [vmem:[%s2 + $0x3d8] sm:$0xff]
    %v174 = vld [vmem:[%s2 + $0x3e0] sm:$0xff]
    %v175 = vld [vmem:[%s2 + $0x3e8] sm:$0xff]
    %v176 = vld [vmem:[%s2 + $0x3f0] sm:$0xff]
    %v177 = vld [vmem:[%s2 + $0x3f8] sm:$0xff]
    %v178 = vld [vmem:[%s3] sm:$0xff]
    %v179 = vld [vmem:[%s3 + $0x8] sm:$0xff]
    %v180 = vld [vmem:[%s3 + $0x10] sm:$0xff]
    %v181 = vld [vmem:[%s3 + $0x18] sm:$0xff]
    %v182 = vld [vmem:[%s3 + $0x20] sm:$0xff]
    %v183 = vld [vmem:[%s3 + $0x28] sm:$0xff]
    %v184 = vld [vmem:[%s3 + $0x30] sm:$0xff]
    %v185 = vld [vmem:[%s3 + $0x38] sm:$0xff]
    %v186 = vld [vmem:[%s3 + $0x40] sm:$0xff]
    %v187 = vld [vmem:[%s3 + $0x48] sm:$0xff]
    %v188 = vld [vmem:[%s3 + $0x50] sm:$0xff]
    %v189 = vld [vmem:[%s3 + $0x58] sm:$0xff]
    %v190 = vld [vmem:[%s3 + $0x60] sm:$0xff]
    %v191 = vld [vmem:[%s3 + $0x68] sm:$0xff]
    %v192 = vld [vmem:[%s3 + $0x70] sm:$0xff]
    %v193 = vld [vmem:[%s3 + $0x78] sm:$0xff]
    %v194 = vld [vmem:[%s3 + $0x80] sm:$0xff]
    %v195 = vld [vmem:[%s3 + $0x88] sm:$0xff]
    %v196 = vld [vmem:[%s3 + $0x90] sm:$0xff]
    %v197 = vld [vmem:[%s3 + $0x98] sm:$0xff]
    %v198 = vld [vmem:[%s3 + $0xa0] sm:$0xff]
    %v199 = vld [vmem:[%s3 + $0xa8] sm:$0xff]
    %v200 = vld [vmem:[%s3 + $0xb0] sm:$0xff]
    %v201 = vld [vmem:[%s3 + $0xb8] sm:$0xff]
    %v202 = vld [vmem:[%s3 + $0xc0] sm:$0xff]
    %v203 = vld [vmem:[%s3 + $0xc8] sm:$0xff]
    %v204 = vld [vmem:[%s3 + $0xd0] sm:$0xff]
    %v205 = vld [vmem:[%s3 + $0xd8] sm:$0xff]
    %v206 = vld [vmem:[%s3 + $0xe0] sm:$0xff]
    %v207 = vld [vmem:[%s3 + $0xe8] sm:$0xff]
    %v208 = vld [vmem:[%s3 + $0xf0] sm:$0xff]
    %v209 = vld [vmem:[%s3 + $0xf8] sm:$0xff]
    %210 = vmatprep.subr.mxu0 0.0
    %211 = vmatpush1.msra.mxu0 %v50
    %212 = vmatprep.subr.mxu0 0.0
    %213 = vmatpush1.msra.mxu0 %v51
    %214 = vmatprep.subr.mxu0 0.0
    %215 = vmatpush1.msra.mxu0 %v52
    %216 = vmatprep.subr.mxu0 0.0
    %217 = vmatpush1.msra.mxu0 %v53
    %218 = vmatprep.subr.mxu0 0.0
    %219 = vmatpush1.msra.mxu0 %v54
    %220 = vmatprep.subr.mxu0 0.0
    %221 = vmatpush1.msra.mxu0 %v55
    %222 = vmatprep.subr.mxu0 0.0
    %223 = vmatpush1.msra.mxu0 %v56
    %224 = vmatprep.subr.mxu0 0.0
    %225 = vmatpush1.msra.mxu0 %v57
    %226 = vmatprep.subr.mxu0 0.0
    %227 = vmatpush1.msra.mxu0 %v58
    %228 = vmatprep.subr.mxu0 0.0
    %229 = vmatpush1.msra.mxu0 %v59
    %230 = vmatprep.subr.mxu0 0.0
    %231 = vmatpush1.msra.mxu0 %v60
    %232 = vmatprep.subr.mxu0 0.0
    %233 = vmatpush1.msra.mxu0 %v61
    %234 = vmatprep.subr.mxu0 0.0
    %235 = vmatpush1.msra.mxu0 %v62
    %236 = vmatprep.subr.mxu0 0.0
    %237 = vmatpush1.msra.mxu0 %v63
    %238 = vmatprep.subr.mxu0 0.0
    %239 = vmatpush1.msra.mxu0 %v64
    %240 = vmatprep.subr.mxu0 0.0
    %241 = vmatpush1.msra.mxu0 %v65
    %242 = vmatprep.subr.mxu0 0.0
    %243 = vmatpush1.msra.mxu0 %v66
    %244 = vmatprep.subr.mxu0 0.0
    %245 = vmatpush1.msra.mxu0 %v67
    %246 = vmatprep.subr.mxu0 0.0
    %247 = vmatpush1.msra.mxu0 %v68
    %248 = vmatprep.subr.mxu0 0.0
    %249 = vmatpush1.msra.mxu0 %v69
    %250 = vmatprep.subr.mxu0 0.0
    %251 = vmatpush1.msra.mxu0 %v70
    %252 = vmatprep.subr.mxu0 0.0
    %253 = vmatpush1.msra.mxu0 %v71
    %254 = vmatprep.subr.mxu0 0.0
    %255 = vmatpush1.msra.mxu0 %v72
    %256 = vmatprep.subr.mxu0 0.0
    %257 = vmatpush1.msra.mxu0 %v73
    %258 = vmatprep.subr.mxu0 0.0
    %259 = vmatpush1.msra.mxu0 %v74
    %260 = vmatprep.subr.mxu0 0.0
    %261 = vmatpush1.msra.mxu0 %v75
    %262 = vmatprep.subr.mxu0 0.0
    %263 = vmatpush1.msra.mxu0 %v76
    %264 = vmatprep.subr.mxu0 0.0
    %265 = vmatpush1.msra.mxu0 %v77
    %266 = vmatprep.subr.mxu0 0.0
    %267 = vmatpush1.msra.mxu0 %v78
    %268 = vmatprep.subr.mxu0 0.0
    %269 = vmatpush1.msra.mxu0 %v79
    %270 = vmatprep.subr.mxu0 0.0
    %271 = vmatpush1.msra.mxu0 %v80
    %272 = vmatprep.subr.mxu0 0.0
    %273 = vmatpush1.msra.mxu0 %v81
    %274 = vmatprep.mubr.f32.mxu0 %v19
    %275 = vmatmul.mubr.f32.gmra.mrb[0].mxu0 %v18
    %v276 = vpop.f32.mrb[0].mxu0
    %v277 = vadd.f32 0.0, %v276
    %v278 = vpop.f32.mrb[0].mxu0
    %279 = vmatprep.mubr.f32.mxu0 %v27
    %280 = vmatmul.mubr.f32.gmra.mrb[0].mxu0 %v26
    %v281 = vpop.f32.mrb[0].mxu0
    %v282 = vadd.f32 0.0, %v281
    %v283 = vpop.f32.mrb[0].mxu0
    %284 = vmatprep.mubr.f32.mxu0 %v35
    %285 = vmatmul.mubr.f32.gmra.mrb[0].mxu0 %v34
    %v286 = vpop.f32.mrb[0].mxu0
    %v287 = vadd.f32 0.0, %v286
    %v288 = vpop.f32.mrb[0].mxu0
    %289 = vmatprep.mubr.f32.mxu0 %v43
    %290 = vmatmul.mubr.f32.gmra.mrb[0].mxu0 %v42
    %v291 = vpop.f32.mrb[0].mxu0
    %v292 = vadd.f32 0.0, %v291
    %v293 = vpop.f32.mrb[0].mxu0
    %294 = vdwg.mxu0
    %295 = vmatprep.subr.mxu0 0.0
    %296 = vmatpush1.msra.mxu0 %v82
    %297 = vmatprep.subr.mxu0 0.0
    %298 = vmatpush1.msra.mxu0 %v83
    %299 = vmatprep.subr.mxu0 0.0
    %300 = vmatpush1.msra.mxu0 %v84
    %301 = vmatprep.subr.mxu0 0.0
    %302 = vmatpush1.msra.mxu0 %v85
    %303 = vmatprep.subr.mxu0 0.0
    %304 = vmatpush1.msra.mxu0 %v86
    %305 = vmatprep.subr.mxu0 0.0
    %306 = vmatpush1.msra.mxu0 %v87
    %307 = vmatprep.subr.mxu0 0.0
    %308 = vmatpush1.msra.mxu0 %v88
    %309 = vmatprep.subr.mxu0 0.0
    %310 = vmatpush1.msra.mxu0 %v89
    %311 = vmatprep.subr.mxu0 0.0
    %312 = vmatpush1.msra.mxu0 %v90
    %313 = vmatprep.subr.mxu0 0.0
    %314 = vmatpush1.msra.mxu0 %v91
    %315 = vmatprep.subr.mxu0 0.0
    %316 = vmatpush1.msra.mxu0 %v92
    %317 = vmatprep.subr.mxu0 0.0
    %318 = vmatpush1.msra.mxu0 %v93
    %319 = vmatprep.subr.mxu0 0.0
    %320 = vmatpush1.msra.mxu0 %v94
    %321 = vmatprep.subr.mxu0 0.0
    %322 = vmatpush1.msra.mxu0 %v95
    %323 = vmatprep.subr.mxu0 0.0
    %324 = vmatpush1.msra.mxu0 %v96
    %325 = vmatprep.subr.mxu0 0.0
    %326 = vmatpush1.msra.mxu0 %v97
    %327 = vmatprep.subr.mxu0 0.0
    %328 = vmatpush1.msra.mxu0 %v98
    %329 = vmatprep.subr.mxu0 0.0
    %330 = vmatpush1.msra.mxu0 %v99
    %331 = vmatprep.subr.mxu0 0.0
    %332 = vmatpush1.msra.mxu0 %v100
    %333 = vmatprep.subr.mxu0 0.0
    %334 = vmatpush1.msra.mxu0 %v101
    %335 = vmatprep.subr.mxu0 0.0
    %336 = vmatpush1.msra.mxu0 %v102
    %337 = vmatprep.subr.mxu0 0.0
    %338 = vmatpush1.msra.mxu0 %v103
    %339 = vmatprep.subr.mxu0 0.0
    %340 = vmatpush1.msra.mxu0 %v104
    %341 = vmatprep.subr.mxu0 0.0
    %342 = vmatpush1.msra.mxu0 %v105
    %343 = vmatprep.subr.mxu0 0.0
    %344 = vmatpush1.msra.mxu0 %v106
    %345 = vmatprep.subr.mxu0 0.0
    %346 = vmatpush1.msra.mxu0 %v107
    %347 = vmatprep.subr.mxu0 0.0
    %348 = vmatpush1.msra.mxu0 %v108
    %349 = vmatprep.subr.mxu0 0.0
    %350 = vmatpush1.msra.mxu0 %v109
    %351 = vmatprep.subr.mxu0 0.0
    %352 = vmatpush1.msra.mxu0 %v110
    %353 = vmatprep.subr.mxu0 0.0
    %354 = vmatpush1.msra.mxu0 %v111
    %355 = vmatprep.subr.mxu0 0.0
    %356 = vmatpush1.msra.mxu0 %v112
    %357 = vmatprep.subr.mxu0 0.0
    %358 = vmatpush1.msra.mxu0 %v113
    %359 = vmatprep.mubr.f32.mxu0 %v21
    %360 = vmatmul.mubr.f32.gmra.mrb[0].mxu0 %v20
    %v361 = vpop.f32.mrb[0].mxu0
    %v362 = vadd.f32 %v277, %v361
    %v363 = vpop.f32.mrb[0].mxu0
    %364 = vmatprep.mubr.f32.mxu0 %v29
    %365 = vmatmul.mubr.f32.gmra.mrb[0].mxu0 %v28
    %v366 = vpop.f32.mrb[0].mxu0
    %v367 = vadd.f32 %v282, %v366
    %v368 = vpop.f32.mrb[0].mxu0
    %369 = vmatprep.mubr.f32.mxu0 %v37
    %370 = vmatmul.mubr.f32.gmra.mrb[0].mxu0 %v36
    %v371 = vpop.f32.mrb[0].mxu0
    %v372 = vadd.f32 %v287, %v371
    %v373 = vpop.f32.mrb[0].mxu0
    %374 = vmatprep.mubr.f32.mxu0 %v45
    %375 = vmatmul.mubr.f32.gmra.mrb[0].mxu0 %v44
    %v376 = vpop.f32.mrb[0].mxu0
    %v377 = vadd.f32 %v292, %v376
    %v378 = vpop.f32.mrb[0].mxu0
    %379 = vdwg.mxu0
    %380 = vmatprep.subr.mxu0 0.0
    %381 = vmatpush1.msra.mxu0 %v114
    %382 = vmatprep.subr.mxu0 0.0
    %383 = vmatpush1.msra.mxu0 %v115
    %384 = vmatprep.subr.mxu0 0.0
    %385 = vmatpush1.msra.mxu0 %v116
    %386 = vmatprep.subr.mxu0 0.0
    %387 = vmatpush1.msra.mxu0 %v117
    %388 = vmatprep.subr.mxu0 0.0
    %389 = vmatpush1.msra.mxu0 %v118
    %390 = vmatprep.subr.mxu0 0.0
    %391 = vmatpush1.msra.mxu0 %v119
    %392 = vmatprep.subr.mxu0 0.0
    %393 = vmatpush1.msra.mxu0 %v120
    %394 = vmatprep.subr.mxu0 0.0
    %395 = vmatpush1.msra.mxu0 %v121
    %396 = vmatprep.subr.mxu0 0.0
    %397 = vmatpush1.msra.mxu0 %v122
    %398 = vmatprep.subr.mxu0 0.0
    %399 = vmatpush1.msra.mxu0 %v123
    %400 = vmatprep.subr.mxu0 0.0
    %401 = vmatpush1.msra.mxu0 %v124
    %402 = vmatprep.subr.mxu0 0.0
    %403 = vmatpush1.msra.mxu0 %v125
    %404 = vmatprep.subr.mxu0 0.0
    %405 = vmatpush1.msra.mxu0 %v126
    %406 = vmatprep.subr.mxu0 0.0
    %407 = vmatpush1.msra.mxu0 %v127
    %408 = vmatprep.subr.mxu0 0.0
    %409 = vmatpush1.msra.mxu0 %v128
    %410 = vmatprep.subr.mxu0 0.0
    %411 = vmatpush1.msra.mxu0 %v129
    %412 = vmatprep.subr.mxu0 0.0
    %413 = vmatpush1.msra.mxu0 %v130
    %414 = vmatprep.subr.mxu0 0.0
    %415 = vmatpush1.msra.mxu0 %v131
    %416 = vmatprep.subr.mxu0 0.0
    %417 = vmatpush1.msra.mxu0 %v132
    %418 = vmatprep.subr.mxu0 0.0
    %419 = vmatpush1.msra.mxu0 %v133
    %420 = vmatprep.subr.mxu0 0.0
    %421 = vmatpush1.msra.mxu0 %v134
    %422 = vmatprep.subr.mxu0 0.0
    %423 = vmatpush1.msra.mxu0 %v135
    %424 = vmatprep.subr.mxu0 0.0
    %425 = vmatpush1.msra.mxu0 %v136
    %426 = vmatprep.subr.mxu0 0.0
    %427 = vmatpush1.msra.mxu0 %v137
    %428 = vmatprep.subr.mxu0 0.0
    %429 = vmatpush1.msra.mxu0 %v138
    %430 = vmatprep.subr.mxu0 0.0
    %431 = vmatpush1.msra.mxu0 %v139
    %432 = vmatprep.subr.mxu0 0.0
    %433 = vmatpush1.msra.mxu0 %v140
    %434 = vmatprep.subr.mxu0 0.0
    %435 = vmatpush1.msra.mxu0 %v141
    %436 = vmatprep.subr.mxu0 0.0
    %437 = vmatpush1.msra.mxu0 %v142
    %438 = vmatprep.subr.mxu0 0.0
    %439 = vmatpush1.msra.mxu0 %v143
    %440 = vmatprep.subr.mxu0 0.0
    %441 = vmatpush1.msra.mxu0 %v144
    %442 = vmatprep.subr.mxu0 0.0
    %443 = vmatpush1.msra.mxu0 %v145
    %444 = vmatprep.mubr.f32.mxu0 %v23
    %445 = vmatmul.mubr.f32.gmra.mrb[0].mxu0 %v22
    %v446 = vpop.f32.mrb[0].mxu0
    %v447 = vadd.f32 %v362, %v446
    %v448 = vpop.f32.mrb[0].mxu0
    %449 = vmatprep.mubr.f32.mxu0 %v31
    %450 = vmatmul.mubr.f32.gmra.mrb[0].mxu0 %v30
    %v451 = vpop.f32.mrb[0].mxu0
    %v452 = vadd.f32 %v367, %v451
    %v453 = vpop.f32.mrb[0].mxu0
    %454 = vmatprep.mubr.f32.mxu0 %v39
    %455 = vmatmul.mubr.f32.gmra.mrb[0].mxu0 %v38
    %v456 = vpop.f32.mrb[0].mxu0
    %v457 = vadd.f32 %v372, %v456
    %v458 = vpop.f32.mrb[0].mxu0
    %459 = vmatprep.mubr.f32.mxu0 %v47
    %460 = vmatmul.mubr.f32.gmra.mrb[0].mxu0 %v46
    %v461 = vpop.f32.mrb[0].mxu0
    %v462 = vadd.f32 %v377, %v461
    %v463 = vpop.f32.mrb[0].mxu0
    %464 = vdwg.mxu0
    %465 = vmatprep.subr.mxu0 0.0
    %466 = vmatpush1.msra.mxu0 %v146
    %467 = vmatprep.subr.mxu0 0.0
    %468 = vmatpush1.msra.mxu0 %v147
    %469 = vmatprep.subr.mxu0 0.0
    %470 = vmatpush1.msra.mxu0 %v148
    %471 = vmatprep.subr.mxu0 0.0
    %472 = vmatpush1.msra.mxu0 %v149
    %473 = vmatprep.subr.mxu0 0.0
    %474 = vmatpush1.msra.mxu0 %v150
    %475 = vmatprep.subr.mxu0 0.0
    %476 = vmatpush1.msra.mxu0 %v151
    %477 = vmatprep.subr.mxu0 0.0
    %478 = vmatpush1.msra.mxu0 %v152
    %479 = vmatprep.subr.mxu0 0.0
    %480 = vmatpush1.msra.mxu0 %v153
    %481 = vmatprep.subr.mxu0 0.0
    %482 = vmatpush1.msra.mxu0 %v154
    %483 = vmatprep.subr.mxu0 0.0
    %484 = vmatpush1.msra.mxu0 %v155
    %485 = vmatprep.subr.mxu0 0.0
    %486 = vmatpush1.msra.mxu0 %v156
    %487 = vmatprep.subr.mxu0 0.0
    %488 = vmatpush1.msra.mxu0 %v157
    %489 = vmatprep.subr.mxu0 0.0
    %490 = vmatpush1.msra.mxu0 %v158
    %491 = vmatprep.subr.mxu0 0.0
    %492 = vmatpush1.msra.mxu0 %v159
    %493 = vmatprep.subr.mxu0 0.0
    %494 = vmatpush1.msra.mxu0 %v160
    %495 = vmatprep.subr.mxu0 0.0
    %496 = vmatpush1.msra.mxu0 %v161
    %497 = vmatprep.subr.mxu0 0.0
    %498 = vmatpush1.msra.mxu0 %v162
    %499 = vmatprep.subr.mxu0 0.0
    %500 = vmatpush1.msra.mxu0 %v163
    %501 = vmatprep.subr.mxu0 0.0
    %502 = vmatpush1.msra.mxu0 %v164
    %503 = vmatprep.subr.mxu0 0.0
    %504 = vmatpush1.msra.mxu0 %v165
    %505 = vmatprep.subr.mxu0 0.0
    %506 = vmatpush1.msra.mxu0 %v166
    %507 = vmatprep.subr.mxu0 0.0
    %508 = vmatpush1.msra.mxu0 %v167
    %509 = vmatprep.subr.mxu0 0.0
    %510 = vmatpush1.msra.mxu0 %v168
    %511 = vmatprep.subr.mxu0 0.0
    %512 = vmatpush1.msra.mxu0 %v169
    %513 = vmatprep.subr.mxu0 0.0
    %514 = vmatpush1.msra.mxu0 %v170
    %515 = vmatprep.subr.mxu0 0.0
    %516 = vmatpush1.msra.mxu0 %v171
    %517 = vmatprep.subr.mxu0 0.0
    %518 = vmatpush1.msra.mxu0 %v172
    %519 = vmatprep.subr.mxu0 0.0
    %520 = vmatpush1.msra.mxu0 %v173
    %521 = vmatprep.subr.mxu0 0.0
    %522 = vmatpush1.msra.mxu0 %v174
    %523 = vmatprep.subr.mxu0 0.0
    %524 = vmatpush1.msra.mxu0 %v175
    %525 = vmatprep.subr.mxu0 0.0
    %526 = vmatpush1.msra.mxu0 %v176
    %527 = vmatprep.subr.mxu0 0.0
    %528 = vmatpush1.msra.mxu0 %v177
    %529 = vmatprep.mubr.f32.mxu0 %v25
    %530 = vmatmul.mubr.f32.gmra.mrb[0].mxu0 %v24
    %v531 = vpop.f32.mrb[0].mxu0
    %v532 = vadd.f32 %v447, %v531
    %v533 = vpop.f32.mrb[0].mxu0
    %534 = vmatprep.mubr.f32.mxu0 %v33
    %535 = vmatmul.mubr.f32.gmra.mrb[0].mxu0 %v32
    %v536 = vpop.f32.mrb[0].mxu0
    %v537 = vadd.f32 %v452, %v536
    %v538 = vpop.f32.mrb[0].mxu0
    %539 = vmatprep.mubr.f32.mxu0 %v41
    %540 = vmatmul.mubr.f32.gmra.mrb[0].mxu0 %v40
    %v541 = vpop.f32.mrb[0].mxu0
    %v542 = vadd.f32 %v457, %v541
    %v543 = vpop.f32.mrb[0].mxu0
    %544 = vmatprep.mubr.f32.mxu0 %v49
    %545 = vmatmul.mubr.f32.gmra.mrb[0].mxu0 %v48
    %v546 = vpop.f32.mrb[0].mxu0
    %v547 = vadd.f32 %v462, %v546
    %v548 = vpop.f32.mrb[0].mxu0
    %549 = vdwg.mxu0
    %v550 = vmul.f32 %v532, 0.03125
    %v551 = vmul.f32 %v537, 0.03125
    %v552 = vmul.f32 %v542, 0.03125
    %v553 = vmul.f32 %v547, 0.03125
    %vm554 = vcmask 261120
    %v556 = vsel %vm554, %v550, 0
    %v559 = vsel %vm554, %v551, 0
    %v562 = vsel %vm554, %v552, 0
    %v565 = vsel %vm554, %v553, 0
    %567 = vmatprep.subr.mxu0 %v179
    %568 = vmatpush1.msra.mxu0 %v178
    %569 = vmatprep.subr.mxu0 %v187
    %570 = vmatpush1.msra.mxu0 %v186
    %571 = vmatprep.subr.mxu0 %v195
    %572 = vmatpush1.msra.mxu0 %v194
    %573 = vmatprep.subr.mxu0 %v203
    %574 = vmatpush1.msra.mxu0 %v202
    %575 = vmatprep.subr.mxu0 0.0
    %576 = vmatpush1.msra.mxu0 0.0
    %577 = vmatprep.subr.mxu0 0.0
    %578 = vmatpush1.msra.mxu0 0.0
    %579 = vmatprep.subr.mxu0 0.0
    %580 = vmatpush1.msra.mxu0 0.0
    %581 = vmatprep.subr.mxu0 0.0
    %582 = vmatpush1.msra.mxu0 0.0
    %583 = vmatprep.subr.mxu0 0.0
    %584 = vmatpush1.msra.mxu0 0.0
    %585 = vmatprep.subr.mxu0 0.0
    %586 = vmatpush1.msra.mxu0 0.0
    %587 = vmatprep.subr.mxu0 0.0
    %588 = vmatpush1.msra.mxu0 0.0
    %589 = vmatprep.subr.mxu0 0.0
    %590 = vmatpush1.msra.mxu0 0.0
    %591 = vmatprep.subr.mxu0 0.0
    %592 = vmatpush1.msra.mxu0 0.0
    %593 = vmatprep.subr.mxu0 0.0
    %594 = vmatpush1.msra.mxu0 0.0
    %595 = vmatprep.subr.mxu0 0.0
    %596 = vmatpush1.msra.mxu0 0.0
    %597 = vmatprep.subr.mxu0 0.0
    %598 = vmatpush1.msra.mxu0 0.0
    %599 = vmatprep.subr.mxu0 0.0
    %600 = vmatpush1.msra.mxu0 0.0
    %601 = vmatprep.subr.mxu0 0.0
    %602 = vmatpush1.msra.mxu0 0.0
    %603 = vmatprep.subr.mxu0 0.0
    %604 = vmatpush1.msra.mxu0 0.0
    %605 = vmatprep.subr.mxu0 0.0
    %606 = vmatpush1.msra.mxu0 0.0
    %607 = vmatprep.subr.mxu0 0.0
    %608 = vmatpush1.msra.mxu0 0.0
    %609 = vmatprep.subr.mxu0 0.0
    %610 = vmatpush1.msra.mxu0 0.0
    %611 = vmatprep.subr.mxu0 0.0
    %612 = vmatpush1.msra.mxu0 0.0
    %613 = vmatprep.subr.mxu0 0.0
    %614 = vmatpush1.msra.mxu0 0.0
    %615 = vmatprep.subr.mxu0 0.0
    %616 = vmatpush1.msra.mxu0 0.0
    %617 = vmatprep.subr.mxu0 0.0
    %618 = vmatpush1.msra.mxu0 0.0
    %619 = vmatprep.subr.mxu0 0.0
    %620 = vmatpush1.msra.mxu0 0.0
    %621 = vmatprep.subr.mxu0 0.0
    %622 = vmatpush1.msra.mxu0 0.0
    %623 = vmatprep.subr.mxu0 0.0
    %624 = vmatpush1.msra.mxu0 0.0
    %625 = vmatprep.subr.mxu0 0.0
    %626 = vmatpush1.msra.mxu0 0.0
    %627 = vmatprep.subr.mxu0 0.0
    %628 = vmatpush1.msra.mxu0 0.0
    %629 = vmatprep.subr.mxu0 0.0
    %630 = vmatpush1.msra.mxu0 0.0
    %631 = vmatprep.mubr.f32.mxu0 0.0
    %632 = vmatmul.mubr.f32.gmra.mrb[0].mxu0 %v556
    %v633 = vpop.f32.mrb[0].mxu0
    %v634 = vadd.f32 0.0, %v633
    %v635 = vpop.f32.mrb[0].mxu0
    %v636 = vadd.f32 0.0, %v635
    %637 = vmatprep.mubr.f32.mxu0 0.0
    %638 = vmatmul.mubr.f32.gmra.mrb[0].mxu0 %v559
    %v639 = vpop.f32.mrb[0].mxu0
    %v640 = vadd.f32 0.0, %v639
    %v641 = vpop.f32.mrb[0].mxu0
    %v642 = vadd.f32 0.0, %v641
    %643 = vmatprep.mubr.f32.mxu0 0.0
    %644 = vmatmul.mubr.f32.gmra.mrb[0].mxu0 %v562
    %v645 = vpop.f32.mrb[0].mxu0
    %v646 = vadd.f32 0.0, %v645
    %v647 = vpop.f32.mrb[0].mxu0
    %v648 = vadd.f32 0.0, %v647
    %649 = vmatprep.mubr.f32.mxu0 0.0
    %650 = vmatmul.mubr.f32.gmra.mrb[0].mxu0 %v565
    %v651 = vpop.f32.mrb[0].mxu0
    %v652 = vadd.f32 0.0, %v651
    %v653 = vpop.f32.mrb[0].mxu0
    %v654 = vadd.f32 0.0, %v653
    %655 = vdwg.mxu0
    %656 = vmatprep.subr.mxu0 %v181
    %657 = vmatpush1.msra.mxu0 %v180
    %658 = vmatprep.subr.mxu0 %v189
    %659 = vmatpush1.msra.mxu0 %v188
    %660 = vmatprep.subr.mxu0 %v197
    %661 = vmatpush1.msra.mxu0 %v196
    %662 = vmatprep.subr.mxu0 %v205
    %663 = vmatpush1.msra.mxu0 %v204
    %664 = vmatprep.subr.mxu0 0.0
    %665 = vmatpush1.msra.mxu0 0.0
    %666 = vmatprep.subr.mxu0 0.0
    %667 = vmatpush1.msra.mxu0 0.0
    %668 = vmatprep.subr.mxu0 0.0
    %669 = vmatpush1.msra.mxu0 0.0
    %670 = vmatprep.subr.mxu0 0.0
    %671 = vmatpush1.msra.mxu0 0.0
    %672 = vmatprep.subr.mxu0 0.0
    %673 = vmatpush1.msra.mxu0 0.0
    %674 = vmatprep.subr.mxu0 0.0
    %675 = vmatpush1.msra.mxu0 0.0
    %676 = vmatprep.subr.mxu0 0.0
    %677 = vmatpush1.msra.mxu0 0.0
    %678 = vmatprep.subr.mxu0 0.0
    %679 = vmatpush1.msra.mxu0 0.0
    %680 = vmatprep.subr.mxu0 0.0
    %681 = vmatpush1.msra.mxu0 0.0
    %682 = vmatprep.subr.mxu0 0.0
    %683 = vmatpush1.msra.mxu0 0.0
    %684 = vmatprep.subr.mxu0 0.0
    %685 = vmatpush1.msra.mxu0 0.0
    %686 = vmatprep.subr.mxu0 0.0
    %687 = vmatpush1.msra.mxu0 0.0
    %688 = vmatprep.subr.mxu0 0.0
    %689 = vmatpush1.msra.mxu0 0.0
    %690 = vmatprep.subr.mxu0 0.0
    %691 = vmatpush1.msra.mxu0 0.0
    %692 = vmatprep.subr.mxu0 0.0
    %693 = vmatpush1.msra.mxu0 0.0
    %694 = vmatprep.subr.mxu0 0.0
    %695 = vmatpush1.msra.mxu0 0.0
    %696 = vmatprep.subr.mxu0 0.0
    %697 = vmatpush1.msra.mxu0 0.0
    %698 = vmatprep.subr.mxu0 0.0
    %699 = vmatpush1.msra.mxu0 0.0
    %700 = vmatprep.subr.mxu0 0.0
    %701 = vmatpush1.msra.mxu0 0.0
    %702 = vmatprep.subr.mxu0 0.0
    %703 = vmatpush1.msra.mxu0 0.0
    %704 = vmatprep.subr.mxu0 0.0
    %705 = vmatpush1.msra.mxu0 0.0
    %706 = vmatprep.subr.mxu0 0.0
    %707 = vmatpush1.msra.mxu0 0.0
    %708 = vmatprep.subr.mxu0 0.0
    %709 = vmatpush1.msra.mxu0 0.0
    %710 = vmatprep.subr.mxu0 0.0
    %711 = vmatpush1.msra.mxu0 0.0
    %712 = vmatprep.subr.mxu0 0.0
    %713 = vmatpush1.msra.mxu0 0.0
    %714 = vmatprep.subr.mxu0 0.0
    %715 = vmatpush1.msra.mxu0 0.0
    %716 = vmatprep.subr.mxu0 0.0
    %717 = vmatpush1.msra.mxu0 0.0
    %718 = vmatprep.subr.mxu0 0.0
    %719 = vmatpush1.msra.mxu0 0.0
    %720 = vmatprep.mubr.f32.mxu0 0.0
    %721 = vmatmul.mubr.f32.gmra.mrb[0].mxu0 %v556
    %v722 = vpop.f32.mrb[0].mxu0
    %v723 = vadd.f32 0.0, %v722
    %v724 = vpop.f32.mrb[0].mxu0
    %v725 = vadd.f32 0.0, %v724
    %726 = vmatprep.mubr.f32.mxu0 0.0
    %727 = vmatmul.mubr.f32.gmra.mrb[0].mxu0 %v559
    %v728 = vpop.f32.mrb[0].mxu0
    %v729 = vadd.f32 0.0, %v728
    %v730 = vpop.f32.mrb[0].mxu0
    %v731 = vadd.f32 0.0, %v730
    %732 = vmatprep.mubr.f32.mxu0 0.0
    %733 = vmatmul.mubr.f32.gmra.mrb[0].mxu0 %v562
    %v734 = vpop.f32.mrb[0].mxu0
    %v735 = vadd.f32 0.0, %v734
    %v736 = vpop.f32.mrb[0].mxu0
    %v737 = vadd.f32 0.0, %v736
    %738 = vmatprep.mubr.f32.mxu0 0.0
    %739 = vmatmul.mubr.f32.gmra.mrb[0].mxu0 %v565
    %v740 = vpop.f32.mrb[0].mxu0
    %v741 = vadd.f32 0.0, %v740
    %v742 = vpop.f32.mrb[0].mxu0
    %v743 = vadd.f32 0.0, %v742
    %744 = vdwg.mxu0
    %745 = vmatprep.subr.mxu0 %v183
    %746 = vmatpush1.msra.mxu0 %v182
    %747 = vmatprep.subr.mxu0 %v191
    %748 = vmatpush1.msra.mxu0 %v190
    %749 = vmatprep.subr.mxu0 %v199
    %750 = vmatpush1.msra.mxu0 %v198
    %751 = vmatprep.subr.mxu0 %v207
    %752 = vmatpush1.msra.mxu0 %v206
    %753 = vmatprep.subr.mxu0 0.0
    %754 = vmatpush1.msra.mxu0 0.0
    %755 = vmatprep.subr.mxu0 0.0
    %756 = vmatpush1.msra.mxu0 0.0
    %757 = vmatprep.subr.mxu0 0.0
    %758 = vmatpush1.msra.mxu0 0.0
    %759 = vmatprep.subr.mxu0 0.0
    %760 = vmatpush1.msra.mxu0 0.0
    %761 = vmatprep.subr.mxu0 0.0
    %762 = vmatpush1.msra.mxu0 0.0
    %763 = vmatprep.subr.mxu0 0.0
    %764 = vmatpush1.msra.mxu0 0.0
    %765 = vmatprep.subr.mxu0 0.0
    %766 = vmatpush1.msra.mxu0 0.0
    %767 = vmatprep.subr.mxu0 0.0
    %768 = vmatpush1.msra.mxu0 0.0
    %769 = vmatprep.subr.mxu0 0.0
    %770 = vmatpush1.msra.mxu0 0.0
    %771 = vmatprep.subr.mxu0 0.0
    %772 = vmatpush1.msra.mxu0 0.0
    %773 = vmatprep.subr.mxu0 0.0
    %774 = vmatpush1.msra.mxu0 0.0
    %775 = vmatprep.subr.mxu0 0.0
    %776 = vmatpush1.msra.mxu0 0.0
    %777 = vmatprep.subr.mxu0 0.0
    %778 = vmatpush1.msra.mxu0 0.0
    %779 = vmatprep.subr.mxu0 0.0
    %780 = vmatpush1.msra.mxu0 0.0
    %781 = vmatprep.subr.mxu0 0.0
    %782 = vmatpush1.msra.mxu0 0.0
    %783 = vmatprep.subr.mxu0 0.0
    %784 = vmatpush1.msra.mxu0 0.0
    %785 = vmatprep.subr.mxu0 0.0
    %786 = vmatpush1.msra.mxu0 0.0
    %787 = vmatprep.subr.mxu0 0.0
    %788 = vmatpush1.msra.mxu0 0.0
    %789 = vmatprep.subr.mxu0 0.0
    %790 = vmatpush1.msra.mxu0 0.0
    %791 = vmatprep.subr.mxu0 0.0
    %792 = vmatpush1.msra.mxu0 0.0
    %793 = vmatprep.subr.mxu0 0.0
    %794 = vmatpush1.msra.mxu0 0.0
    %795 = vmatprep.subr.mxu0 0.0
    %796 = vmatpush1.msra.mxu0 0.0
    %797 = vmatprep.subr.mxu0 0.0
    %798 = vmatpush1.msra.mxu0 0.0
    %799 = vmatprep.subr.mxu0 0.0
    %800 = vmatpush1.msra.mxu0 0.0
    %801 = vmatprep.subr.mxu0 0.0
    %802 = vmatpush1.msra.mxu0 0.0
    %803 = vmatprep.subr.mxu0 0.0
    %804 = vmatpush1.msra.mxu0 0.0
    %805 = vmatprep.subr.mxu0 0.0
    %806 = vmatpush1.msra.mxu0 0.0
    %807 = vmatprep.subr.mxu0 0.0
    %808 = vmatpush1.msra.mxu0 0.0
    %809 = vmatprep.mubr.f32.mxu0 0.0
    %810 = vmatmul.mubr.f32.gmra.mrb[0].mxu0 %v556
    %v811 = vpop.f32.mrb[0].mxu0
    %v812 = vadd.f32 0.0, %v811
    %v813 = vpop.f32.mrb[0].mxu0
    %v814 = vadd.f32 0.0, %v813
    %815 = vmatprep.mubr.f32.mxu0 0.0
    %816 = vmatmul.mubr.f32.gmra.mrb[0].mxu0 %v559
    %v817 = vpop.f32.mrb[0].mxu0
    %v818 = vadd.f32 0.0, %v817
    %v819 = vpop.f32.mrb[0].mxu0
    %v820 = vadd.f32 0.0, %v819
    %821 = vmatprep.mubr.f32.mxu0 0.0
    %822 = vmatmul.mubr.f32.gmra.mrb[0].mxu0 %v562
    %v823 = vpop.f32.mrb[0].mxu0
    %v824 = vadd.f32 0.0, %v823
    %v825 = vpop.f32.mrb[0].mxu0
    %v826 = vadd.f32 0.0, %v825
    %827 = vmatprep.mubr.f32.mxu0 0.0
    %828 = vmatmul.mubr.f32.gmra.mrb[0].mxu0 %v565
    %v829 = vpop.f32.mrb[0].mxu0
    %v830 = vadd.f32 0.0, %v829
    %v831 = vpop.f32.mrb[0].mxu0
    %v832 = vadd.f32 0.0, %v831
    %833 = vdwg.mxu0
    %834 = vmatprep.subr.mxu0 %v185
    %835 = vmatpush1.msra.mxu0 %v184
    %836 = vmatprep.subr.mxu0 %v193
    %837 = vmatpush1.msra.mxu0 %v192
    %838 = vmatprep.subr.mxu0 %v201
    %839 = vmatpush1.msra.mxu0 %v200
    %840 = vmatprep.subr.mxu0 %v209
    %841 = vmatpush1.msra.mxu0 %v208
    %842 = vmatprep.subr.mxu0 0.0
    %843 = vmatpush1.msra.mxu0 0.0
    %844 = vmatprep.subr.mxu0 0.0
    %845 = vmatpush1.msra.mxu0 0.0
    %846 = vmatprep.subr.mxu0 0.0
    %847 = vmatpush1.msra.mxu0 0.0
    %848 = vmatprep.subr.mxu0 0.0
    %849 = vmatpush1.msra.mxu0 0.0
    %850 = vmatprep.subr.mxu0 0.0
    %851 = vmatpush1.msra.mxu0 0.0
    %852 = vmatprep.subr.mxu0 0.0
    %853 = vmatpush1.msra.mxu0 0.0
    %854 = vmatprep.subr.mxu0 0.0
    %855 = vmatpush1.msra.mxu0 0.0
    %856 = vmatprep.subr.mxu0 0.0
    %857 = vmatpush1.msra.mxu0 0.0
    %858 = vmatprep.subr.mxu0 0.0
    %859 = vmatpush1.msra.mxu0 0.0
    %860 = vmatprep.subr.mxu0 0.0
    %861 = vmatpush1.msra.mxu0 0.0
    %862 = vmatprep.subr.mxu0 0.0
    %863 = vmatpush1.msra.mxu0 0.0
    %864 = vmatprep.subr.mxu0 0.0
    %865 = vmatpush1.msra.mxu0 0.0
    %866 = vmatprep.subr.mxu0 0.0
    %867 = vmatpush1.msra.mxu0 0.0
    %868 = vmatprep.subr.mxu0 0.0
    %869 = vmatpush1.msra.mxu0 0.0
    %870 = vmatprep.subr.mxu0 0.0
    %871 = vmatpush1.msra.mxu0 0.0
    %872 = vmatprep.subr.mxu0 0.0
    %873 = vmatpush1.msra.mxu0 0.0
    %874 = vmatprep.subr.mxu0 0.0
    %875 = vmatpush1.msra.mxu0 0.0
    %876 = vmatprep.subr.mxu0 0.0
    %877 = vmatpush1.msra.mxu0 0.0
    %878 = vmatprep.subr.mxu0 0.0
    %879 = vmatpush1.msra.mxu0 0.0
    %880 = vmatprep.subr.mxu0 0.0
    %881 = vmatpush1.msra.mxu0 0.0
    %882 = vmatprep.subr.mxu0 0.0
    %883 = vmatpush1.msra.mxu0 0.0
    %884 = vmatprep.subr.mxu0 0.0
    %885 = vmatpush1.msra.mxu0 0.0
    %886 = vmatprep.subr.mxu0 0.0
    %887 = vmatpush1.msra.mxu0 0.0
    %888 = vmatprep.subr.mxu0 0.0
    %889 = vmatpush1.msra.mxu0 0.0
    %890 = vmatprep.subr.mxu0 0.0
    %891 = vmatpush1.msra.mxu0 0.0
    %892 = vmatprep.subr.mxu0 0.0
    %893 = vmatpush1.msra.mxu0 0.0
    %894 = vmatprep.subr.mxu0 0.0
    %895 = vmatpush1.msra.mxu0 0.0
    %896 = vmatprep.subr.mxu0 0.0
    %897 = vmatpush1.msra.mxu0 0.0
    %898 = vmatprep.mubr.f32.mxu0 0.0
    %899 = vmatmul.mubr.f32.gmra.mrb[0].mxu0 %v556
    %v900 = vpop.f32.mrb[0].mxu0
    %v901 = vadd.f32 0.0, %v900
    %v902 = vpop.f32.mrb[0].mxu0
    %v903 = vadd.f32 0.0, %v902
    %904 = vmatprep.mubr.f32.mxu0 0.0
    %905 = vmatmul.mubr.f32.gmra.mrb[0].mxu0 %v559
    %v906 = vpop.f32.mrb[0].mxu0
    %v907 = vadd.f32 0.0, %v906
    %v908 = vpop.f32.mrb[0].mxu0
    %v909 = vadd.f32 0.0, %v908
    %910 = vmatprep.mubr.f32.mxu0 0.0
    %911 = vmatmul.mubr.f32.gmra.mrb[0].mxu0 %v562
    %v912 = vpop.f32.mrb[0].mxu0
    %v913 = vadd.f32 0.0, %v912
    %v914 = vpop.f32.mrb[0].mxu0
    %v915 = vadd.f32 0.0, %v914
    %916 = vmatprep.mubr.f32.mxu0 0.0
    %917 = vmatmul.mubr.f32.gmra.mrb[0].mxu0 %v565
    %v918 = vpop.f32.mrb[0].mxu0
    %v919 = vadd.f32 0.0, %v918
    %v920 = vpop.f32.mrb[0].mxu0
    %v921 = vadd.f32 0.0, %v920
    %922 = vdwg.mxu0
    %v923 = vsub.f32 %v18, %v634
    %v924 = vsub.f32 %v19, %v636
    %v925 = vsub.f32 %v20, %v723
    %v926 = vsub.f32 %v21, %v725
    %v927 = vsub.f32 %v22, %v812
    %v928 = vsub.f32 %v23, %v814
    %v929 = vsub.f32 %v24, %v901
    %v930 = vsub.f32 %v25, %v903
    %v931 = vsub.f32 %v26, %v640
    %v932 = vsub.f32 %v27, %v642
    %v933 = vsub.f32 %v28, %v729
    %v934 = vsub.f32 %v29, %v731
    %v935 = vsub.f32 %v30, %v818
    %v936 = vsub.f32 %v31, %v820
    %v937 = vsub.f32 %v32, %v907
    %v938 = vsub.f32 %v33, %v909
    %v939 = vsub.f32 %v34, %v646
    %v940 = vsub.f32 %v35, %v648
    %v941 = vsub.f32 %v36, %v735
    %v942 = vsub.f32 %v37, %v737
    %v943 = vsub.f32 %v38, %v824
    %v944 = vsub.f32 %v39, %v826
    %v945 = vsub.f32 %v40, %v913
    %v946 = vsub.f32 %v41, %v915
    %v947 = vsub.f32 %v42, %v652
    %v948 = vsub.f32 %v43, %v654
    %v949 = vsub.f32 %v44, %v741
    %v950 = vsub.f32 %v45, %v743
    %v951 = vsub.f32 %v46, %v830
    %v952 = vsub.f32 %v47, %v832
    %v953 = vsub.f32 %v48, %v919
    %v954 = vsub.f32 %v49, %v921
    %v955 = vmul.f32 %v923, %v923
    %v956 = vmul.f32 %v924, %v924
    %v957 = vmul.f32 %v925, %v925
    %v958 = vmul.f32 %v926, %v926
    %v959 = vmul.f32 %v927, %v927
    %v960 = vmul.f32 %v928, %v928
    %v961 = vmul.f32 %v929, %v929
    %v962 = vmul.f32 %v930, %v930
    %v963 = vmul.f32 %v931, %v931
    %v964 = vmul.f32 %v932, %v932
    %v965 = vmul.f32 %v933, %v933
    %v966 = vmul.f32 %v934, %v934
    %v967 = vmul.f32 %v935, %v935
    %v968 = vmul.f32 %v936, %v936
    %v969 = vmul.f32 %v937, %v937
    %v970 = vmul.f32 %v938, %v938
    %v971 = vmul.f32 %v939, %v939
    %v972 = vmul.f32 %v940, %v940
    %v973 = vmul.f32 %v941, %v941
    %v974 = vmul.f32 %v942, %v942
    %v975 = vmul.f32 %v943, %v943
    %v976 = vmul.f32 %v944, %v944
    %v977 = vmul.f32 %v945, %v945
    %v978 = vmul.f32 %v946, %v946
    %v979 = vmul.f32 %v947, %v947
    %v980 = vmul.f32 %v948, %v948
    %v981 = vmul.f32 %v949, %v949
    %v982 = vmul.f32 %v950, %v950
    %v983 = vmul.f32 %v951, %v951
    %v984 = vmul.f32 %v952, %v952
    %v985 = vmul.f32 %v953, %v953
    %v986 = vmul.f32 %v954, %v954
    %987 = vmatprep.subr.mxu0 0.0
    %988 = vmatpush1.msra.mxu0 %v50
    %989 = vmatprep.subr.mxu0 0.0
    %990 = vmatpush1.msra.mxu0 %v51
    %991 = vmatprep.subr.mxu0 0.0
    %992 = vmatpush1.msra.mxu0 %v52
    %993 = vmatprep.subr.mxu0 0.0
    %994 = vmatpush1.msra.mxu0 %v53
    %995 = vmatprep.subr.mxu0 0.0
    %996 = vmatpush1.msra.mxu0 %v54
    %997 = vmatprep.subr.mxu0 0.0
    %998 = vmatpush1.msra.mxu0 %v55
    %999 = vmatprep.subr.mxu0 0.0
    %1000 = vmatpush1.msra.mxu0 %v56
    %1001 = vmatprep.subr.mxu0 0.0
    %1002 = vmatpush1.msra.mxu0 %v57
    %1003 = vmatprep.subr.mxu0 0.0
    %1004 = vmatpush1.msra.mxu0 %v58
    %1005 = vmatprep.subr.mxu0 0.0
    %1006 = vmatpush1.msra.mxu0 %v59
    %1007 = vmatprep.subr.mxu0 0.0
    %1008 = vmatpush1.msra.mxu0 %v60
    %1009 = vmatprep.subr.mxu0 0.0
    %1010 = vmatpush1.msra.mxu0 %v61
    %1011 = vmatprep.subr.mxu0 0.0
    %1012 = vmatpush1.msra.mxu0 %v62
    %1013 = vmatprep.subr.mxu0 0.0
    %1014 = vmatpush1.msra.mxu0 %v63
    %1015 = vmatprep.subr.mxu0 0.0
    %1016 = vmatpush1.msra.mxu0 %v64
    %1017 = vmatprep.subr.mxu0 0.0
    %1018 = vmatpush1.msra.mxu0 %v65
    %1019 = vmatprep.subr.mxu0 0.0
    %1020 = vmatpush1.msra.mxu0 %v66
    %1021 = vmatprep.subr.mxu0 0.0
    %1022 = vmatpush1.msra.mxu0 %v67
    %1023 = vmatprep.subr.mxu0 0.0
    %1024 = vmatpush1.msra.mxu0 %v68
    %1025 = vmatprep.subr.mxu0 0.0
    %1026 = vmatpush1.msra.mxu0 %v69
    %1027 = vmatprep.subr.mxu0 0.0
    %1028 = vmatpush1.msra.mxu0 %v70
    %1029 = vmatprep.subr.mxu0 0.0
    %1030 = vmatpush1.msra.mxu0 %v71
    %1031 = vmatprep.subr.mxu0 0.0
    %1032 = vmatpush1.msra.mxu0 %v72
    %1033 = vmatprep.subr.mxu0 0.0
    %1034 = vmatpush1.msra.mxu0 %v73
    %1035 = vmatprep.subr.mxu0 0.0
    %1036 = vmatpush1.msra.mxu0 %v74
    %1037 = vmatprep.subr.mxu0 0.0
    %1038 = vmatpush1.msra.mxu0 %v75
    %1039 = vmatprep.subr.mxu0 0.0
    %1040 = vmatpush1.msra.mxu0 %v76
    %1041 = vmatprep.subr.mxu0 0.0
    %1042 = vmatpush1.msra.mxu0 %v77
    %1043 = vmatprep.subr.mxu0 0.0
    %1044 = vmatpush1.msra.mxu0 %v78
    %1045 = vmatprep.subr.mxu0 0.0
    %1046 = vmatpush1.msra.mxu0 %v79
    %1047 = vmatprep.subr.mxu0 0.0
    %1048 = vmatpush1.msra.mxu0 %v80
    %1049 = vmatprep.subr.mxu0 0.0
    %1050 = vmatpush1.msra.mxu0 %v81
    %1051 = vmatprep.mubr.f32.mxu0 %v956
    %1052 = vmatmul.mubr.f32.gmra.mrb[0].mxu0 %v955
    %v1053 = vpop.f32.mrb[0].mxu0
    %v1054 = vadd.f32 0.0, %v1053
    %v1055 = vpop.f32.mrb[0].mxu0
    %1056 = vmatprep.mubr.f32.mxu0 %v964
    %1057 = vmatmul.mubr.f32.gmra.mrb[0].mxu0 %v963
    %v1058 = vpop.f32.mrb[0].mxu0
    %v1059 = vadd.f32 0.0, %v1058
    %v1060 = vpop.f32.mrb[0].mxu0
    %1061 = vmatprep.mubr.f32.mxu0 %v972
    %1062 = vmatmul.mubr.f32.gmra.mrb[0].mxu0 %v971
    %v1063 = vpop.f32.mrb[0].mxu0
    %v1064 = vadd.f32 0.0, %v1063
    %v1065 = vpop.f32.mrb[0].mxu0
    %1066 = vmatprep.mubr.f32.mxu0 %v980
    %1067 = vmatmul.mubr.f32.gmra.mrb[0].mxu0 %v979
    %v1068 = vpop.f32.mrb[0].mxu0
    %v1069 = vadd.f32 0.0, %v1068
    %v1070 = vpop.f32.mrb[0].mxu0
    %1071 = vdwg.mxu0
    %1072 = vmatprep.subr.mxu0 0.0
    %1073 = vmatpush1.msra.mxu0 %v82
    %1074 = vmatprep.subr.mxu0 0.0
    %1075 = vmatpush1.msra.mxu0 %v83
    %1076 = vmatprep.subr.mxu0 0.0
    %1077 = vmatpush1.msra.mxu0 %v84
    %1078 = vmatprep.subr.mxu0 0.0
    %1079 = vmatpush1.msra.mxu0 %v85
    %1080 = vmatprep.subr.mxu0 0.0
    %1081 = vmatpush1.msra.mxu0 %v86
    %1082 = vmatprep.subr.mxu0 0.0
    %1083 = vmatpush1.msra.mxu0 %v87
    %1084 = vmatprep.subr.mxu0 0.0
    %1085 = vmatpush1.msra.mxu0 %v88
    %1086 = vmatprep.subr.mxu0 0.0
    %1087 = vmatpush1.msra.mxu0 %v89
    %1088 = vmatprep.subr.mxu0 0.0
    %1089 = vmatpush1.msra.mxu0 %v90
    %1090 = vmatprep.subr.mxu0 0.0
    %1091 = vmatpush1.msra.mxu0 %v91
    %1092 = vmatprep.subr.mxu0 0.0
    %1093 = vmatpush1.msra.mxu0 %v92
    %1094 = vmatprep.subr.mxu0 0.0
    %1095 = vmatpush1.msra.mxu0 %v93
    %1096 = vmatprep.subr.mxu0 0.0
    %1097 = vmatpush1.msra.mxu0 %v94
    %1098 = vmatprep.subr.mxu0 0.0
    %1099 = vmatpush1.msra.mxu0 %v95
    %1100 = vmatprep.subr.mxu0 0.0
    %1101 = vmatpush1.msra.mxu0 %v96
    %1102 = vmatprep.subr.mxu0 0.0
    %1103 = vmatpush1.msra.mxu0 %v97
    %1104 = vmatprep.subr.mxu0 0.0
    %1105 = vmatpush1.msra.mxu0 %v98
    %1106 = vmatprep.subr.mxu0 0.0
    %1107 = vmatpush1.msra.mxu0 %v99
    %1108 = vmatprep.subr.mxu0 0.0
    %1109 = vmatpush1.msra.mxu0 %v100
    %1110 = vmatprep.subr.mxu0 0.0
    %1111 = vmatpush1.msra.mxu0 %v101
    %1112 = vmatprep.subr.mxu0 0.0
    %1113 = vmatpush1.msra.mxu0 %v102
    %1114 = vmatprep.subr.mxu0 0.0
    %1115 = vmatpush1.msra.mxu0 %v103
    %1116 = vmatprep.subr.mxu0 0.0
    %1117 = vmatpush1.msra.mxu0 %v104
    %1118 = vmatprep.subr.mxu0 0.0
    %1119 = vmatpush1.msra.mxu0 %v105
    %1120 = vmatprep.subr.mxu0 0.0
    %1121 = vmatpush1.msra.mxu0 %v106
    %1122 = vmatprep.subr.mxu0 0.0
    %1123 = vmatpush1.msra.mxu0 %v107
    %1124 = vmatprep.subr.mxu0 0.0
    %1125 = vmatpush1.msra.mxu0 %v108
    %1126 = vmatprep.subr.mxu0 0.0
    %1127 = vmatpush1.msra.mxu0 %v109
    %1128 = vmatprep.subr.mxu0 0.0
    %1129 = vmatpush1.msra.mxu0 %v110
    %1130 = vmatprep.subr.mxu0 0.0
    %1131 = vmatpush1.msra.mxu0 %v111
    %1132 = vmatprep.subr.mxu0 0.0
    %1133 = vmatpush1.msra.mxu0 %v112
    %1134 = vmatprep.subr.mxu0 0.0
    %1135 = vmatpush1.msra.mxu0 %v113
    %1136 = vmatprep.mubr.f32.mxu0 %v958
    %1137 = vmatmul.mubr.f32.gmra.mrb[0].mxu0 %v957
    %v1138 = vpop.f32.mrb[0].mxu0
    %v1139 = vadd.f32 %v1054, %v1138
    %v1140 = vpop.f32.mrb[0].mxu0
    %1141 = vmatprep.mubr.f32.mxu0 %v966
    %1142 = vmatmul.mubr.f32.gmra.mrb[0].mxu0 %v965
    %v1143 = vpop.f32.mrb[0].mxu0
    %v1144 = vadd.f32 %v1059, %v1143
    %v1145 = vpop.f32.mrb[0].mxu0
    %1146 = vmatprep.mubr.f32.mxu0 %v974
    %1147 = vmatmul.mubr.f32.gmra.mrb[0].mxu0 %v973
    %v1148 = vpop.f32.mrb[0].mxu0
    %v1149 = vadd.f32 %v1064, %v1148
    %v1150 = vpop.f32.mrb[0].mxu0
    %1151 = vmatprep.mubr.f32.mxu0 %v982
    %1152 = vmatmul.mubr.f32.gmra.mrb[0].mxu0 %v981
    %v1153 = vpop.f32.mrb[0].mxu0
    %v1154 = vadd.f32 %v1069, %v1153
    %v1155 = vpop.f32.mrb[0].mxu0
    %1156 = vdwg.mxu0
    %1157 = vmatprep.subr.mxu0 0.0
    %1158 = vmatpush1.msra.mxu0 %v114
    %1159 = vmatprep.subr.mxu0 0.0
    %1160 = vmatpush1.msra.mxu0 %v115
    %1161 = vmatprep.subr.mxu0 0.0
    %1162 = vmatpush1.msra.mxu0 %v116
    %1163 = vmatprep.subr.mxu0 0.0
    %1164 = vmatpush1.msra.mxu0 %v117
    %1165 = vmatprep.subr.mxu0 0.0
    %1166 = vmatpush1.msra.mxu0 %v118
    %1167 = vmatprep.subr.mxu0 0.0
    %1168 = vmatpush1.msra.mxu0 %v119
    %1169 = vmatprep.subr.mxu0 0.0
    %1170 = vmatpush1.msra.mxu0 %v120
    %1171 = vmatprep.subr.mxu0 0.0
    %1172 = vmatpush1.msra.mxu0 %v121
    %1173 = vmatprep.subr.mxu0 0.0
    %1174 = vmatpush1.msra.mxu0 %v122
    %1175 = vmatprep.subr.mxu0 0.0
    %1176 = vmatpush1.msra.mxu0 %v123
    %1177 = vmatprep.subr.mxu0 0.0
    %1178 = vmatpush1.msra.mxu0 %v124
    %1179 = vmatprep.subr.mxu0 0.0
    %1180 = vmatpush1.msra.mxu0 %v125
    %1181 = vmatprep.subr.mxu0 0.0
    %1182 = vmatpush1.msra.mxu0 %v126
    %1183 = vmatprep.subr.mxu0 0.0
    %1184 = vmatpush1.msra.mxu0 %v127
    %1185 = vmatprep.subr.mxu0 0.0
    %1186 = vmatpush1.msra.mxu0 %v128
    %1187 = vmatprep.subr.mxu0 0.0
    %1188 = vmatpush1.msra.mxu0 %v129
    %1189 = vmatprep.subr.mxu0 0.0
    %1190 = vmatpush1.msra.mxu0 %v130
    %1191 = vmatprep.subr.mxu0 0.0
    %1192 = vmatpush1.msra.mxu0 %v131
    %1193 = vmatprep.subr.mxu0 0.0
    %1194 = vmatpush1.msra.mxu0 %v132
    %1195 = vmatprep.subr.mxu0 0.0
    %1196 = vmatpush1.msra.mxu0 %v133
    %1197 = vmatprep.subr.mxu0 0.0
    %1198 = vmatpush1.msra.mxu0 %v134
    %1199 = vmatprep.subr.mxu0 0.0
    %1200 = vmatpush1.msra.mxu0 %v135
    %1201 = vmatprep.subr.mxu0 0.0
    %1202 = vmatpush1.msra.mxu0 %v136
    %1203 = vmatprep.subr.mxu0 0.0
    %1204 = vmatpush1.msra.mxu0 %v137
    %1205 = vmatprep.subr.mxu0 0.0
    %1206 = vmatpush1.msra.mxu0 %v138
    %1207 = vmatprep.subr.mxu0 0.0
    %1208 = vmatpush1.msra.mxu0 %v139
    %1209 = vmatprep.subr.mxu0 0.0
    %1210 = vmatpush1.msra.mxu0 %v140
    %1211 = vmatprep.subr.mxu0 0.0
    %1212 = vmatpush1.msra.mxu0 %v141
    %1213 = vmatprep.subr.mxu0 0.0
    %1214 = vmatpush1.msra.mxu0 %v142
    %1215 = vmatprep.subr.mxu0 0.0
    %1216 = vmatpush1.msra.mxu0 %v143
    %1217 = vmatprep.subr.mxu0 0.0
    %1218 = vmatpush1.msra.mxu0 %v144
    %1219 = vmatprep.subr.mxu0 0.0
    %1220 = vmatpush1.msra.mxu0 %v145
    %1221 = vmatprep.mubr.f32.mxu0 %v960
    %1222 = vmatmul.mubr.f32.gmra.mrb[0].mxu0 %v959
    %v1223 = vpop.f32.mrb[0].mxu0
    %v1224 = vadd.f32 %v1139, %v1223
    %v1225 = vpop.f32.mrb[0].mxu0
    %1226 = vmatprep.mubr.f32.mxu0 %v968
    %1227 = vmatmul.mubr.f32.gmra.mrb[0].mxu0 %v967
    %v1228 = vpop.f32.mrb[0].mxu0
    %v1229 = vadd.f32 %v1144, %v1228
    %v1230 = vpop.f32.mrb[0].mxu0
    %1231 = vmatprep.mubr.f32.mxu0 %v976
    %1232 = vmatmul.mubr.f32.gmra.mrb[0].mxu0 %v975
    %v1233 = vpop.f32.mrb[0].mxu0
    %v1234 = vadd.f32 %v1149, %v1233
    %v1235 = vpop.f32.mrb[0].mxu0
    %1236 = vmatprep.mubr.f32.mxu0 %v984
    %1237 = vmatmul.mubr.f32.gmra.mrb[0].mxu0 %v983
    %v1238 = vpop.f32.mrb[0].mxu0
    %v1239 = vadd.f32 %v1154, %v1238
    %v1240 = vpop.f32.mrb[0].mxu0
    %1241 = vdwg.mxu0
    %1242 = vmatprep.subr.mxu0 0.0
    %1243 = vmatpush1.msra.mxu0 %v146
    %1244 = vmatprep.subr.mxu0 0.0
    %1245 = vmatpush1.msra.mxu0 %v147
    %1246 = vmatprep.subr.mxu0 0.0
    %1247 = vmatpush1.msra.mxu0 %v148
    %1248 = vmatprep.subr.mxu0 0.0
    %1249 = vmatpush1.msra.mxu0 %v149
    %1250 = vmatprep.subr.mxu0 0.0
    %1251 = vmatpush1.msra.mxu0 %v150
    %1252 = vmatprep.subr.mxu0 0.0
    %1253 = vmatpush1.msra.mxu0 %v151
    %1254 = vmatprep.subr.mxu0 0.0
    %1255 = vmatpush1.msra.mxu0 %v152
    %1256 = vmatprep.subr.mxu0 0.0
    %1257 = vmatpush1.msra.mxu0 %v153
    %1258 = vmatprep.subr.mxu0 0.0
    %1259 = vmatpush1.msra.mxu0 %v154
    %1260 = vmatprep.subr.mxu0 0.0
    %1261 = vmatpush1.msra.mxu0 %v155
    %1262 = vmatprep.subr.mxu0 0.0
    %1263 = vmatpush1.msra.mxu0 %v156
    %1264 = vmatprep.subr.mxu0 0.0
    %1265 = vmatpush1.msra.mxu0 %v157
    %1266 = vmatprep.subr.mxu0 0.0
    %1267 = vmatpush1.msra.mxu0 %v158
    %1268 = vmatprep.subr.mxu0 0.0
    %1269 = vmatpush1.msra.mxu0 %v159
    %1270 = vmatprep.subr.mxu0 0.0
    %1271 = vmatpush1.msra.mxu0 %v160
    %1272 = vmatprep.subr.mxu0 0.0
    %1273 = vmatpush1.msra.mxu0 %v161
    %1274 = vmatprep.subr.mxu0 0.0
    %1275 = vmatpush1.msra.mxu0 %v162
    %1276 = vmatprep.subr.mxu0 0.0
    %1277 = vmatpush1.msra.mxu0 %v163
    %1278 = vmatprep.subr.mxu0 0.0
    %1279 = vmatpush1.msra.mxu0 %v164
    %1280 = vmatprep.subr.mxu0 0.0
    %1281 = vmatpush1.msra.mxu0 %v165
    %1282 = vmatprep.subr.mxu0 0.0
    %1283 = vmatpush1.msra.mxu0 %v166
    %1284 = vmatprep.subr.mxu0 0.0
    %1285 = vmatpush1.msra.mxu0 %v167
    %1286 = vmatprep.subr.mxu0 0.0
    %1287 = vmatpush1.msra.mxu0 %v168
    %1288 = vmatprep.subr.mxu0 0.0
    %1289 = vmatpush1.msra.mxu0 %v169
    %1290 = vmatprep.subr.mxu0 0.0
    %1291 = vmatpush1.msra.mxu0 %v170
    %1292 = vmatprep.subr.mxu0 0.0
    %1293 = vmatpush1.msra.mxu0 %v171
    %1294 = vmatprep.subr.mxu0 0.0
    %1295 = vmatpush1.msra.mxu0 %v172
    %1296 = vmatprep.subr.mxu0 0.0
    %1297 = vmatpush1.msra.mxu0 %v173
    %1298 = vmatprep.subr.mxu0 0.0
    %1299 = vmatpush1.msra.mxu0 %v174
    %1300 = vmatprep.subr.mxu0 0.0
    %1301 = vmatpush1.msra.mxu0 %v175
    %1302 = vmatprep.subr.mxu0 0.0
    %1303 = vmatpush1.msra.mxu0 %v176
    %1304 = vmatprep.subr.mxu0 0.0
    %1305 = vmatpush1.msra.mxu0 %v177
    %1306 = vmatprep.mubr.f32.mxu0 %v962
    %1307 = vmatmul.mubr.f32.gmra.mrb[0].mxu0 %v961
    %v1308 = vpop.f32.mrb[0].mxu0
    %v1309 = vadd.f32 %v1224, %v1308
    %v1310 = vpop.f32.mrb[0].mxu0
    %1311 = vmatprep.mubr.f32.mxu0 %v970
    %1312 = vmatmul.mubr.f32.gmra.mrb[0].mxu0 %v969
    %v1313 = vpop.f32.mrb[0].mxu0
    %v1314 = vadd.f32 %v1229, %v1313
    %v1315 = vpop.f32.mrb[0].mxu0
    %1316 = vmatprep.mubr.f32.mxu0 %v978
    %1317 = vmatmul.mubr.f32.gmra.mrb[0].mxu0 %v977
    %v1318 = vpop.f32.mrb[0].mxu0
    %v1319 = vadd.f32 %v1234, %v1318
    %v1320 = vpop.f32.mrb[0].mxu0
    %1321 = vmatprep.mubr.f32.mxu0 %v986
    %1322 = vmatmul.mubr.f32.gmra.mrb[0].mxu0 %v985
    %v1323 = vpop.f32.mrb[0].mxu0
    %v1324 = vadd.f32 %v1239, %v1323
    %v1325 = vpop.f32.mrb[0].mxu0
    %1326 = vdwg.mxu0
    %v1327 = vmul.f32 %v1309, 0.03125
    %v1328 = vmul.f32 %v1314, 0.03125
    %v1329 = vmul.f32 %v1319, 0.03125
    %v1330 = vmul.f32 %v1324, 0.03125
    %v1331 = vadd.f32 %v1327, 1e-05
    %v1332 = vadd.f32 %v1328, 1e-05
    %v1333 = vadd.f32 %v1329, 1e-05
    %v1334 = vadd.f32 %v1330, 1e-05
    %v1335 = vrsqrt.pop %v1331
    %v1336 = vrsqrt.pop %v1332
    %v1337 = vrsqrt.pop %v1333
    %v1338 = vrsqrt.pop %v1334
    %v1340 = vsel %vm554, %v1335, 0
    %v1343 = vsel %vm554, %v1336, 0
    %v1346 = vsel %vm554, %v1337, 0
    %v1349 = vsel %vm554, %v1338, 0
    %1351 = vmatprep.subr.mxu0 %v179
    %1352 = vmatpush1.msra.mxu0 %v178
    %1353 = vmatprep.subr.mxu0 %v187
    %1354 = vmatpush1.msra.mxu0 %v186
    %1355 = vmatprep.subr.mxu0 %v195
    %1356 = vmatpush1.msra.mxu0 %v194
    %1357 = vmatprep.subr.mxu0 %v203
    %1358 = vmatpush1.msra.mxu0 %v202
    %1359 = vmatprep.subr.mxu0 0.0
    %1360 = vmatpush1.msra.mxu0 0.0
    %1361 = vmatprep.subr.mxu0 0.0
    %1362 = vmatpush1.msra.mxu0 0.0
    %1363 = vmatprep.subr.mxu0 0.0
    %1364 = vmatpush1.msra.mxu0 0.0
    %1365 = vmatprep.subr.mxu0 0.0
    %1366 = vmatpush1.msra.mxu0 0.0
    %1367 = vmatprep.subr.mxu0 0.0
    %1368 = vmatpush1.msra.mxu0 0.0
    %1369 = vmatprep.subr.mxu0 0.0
    %1370 = vmatpush1.msra.mxu0 0.0
    %1371 = vmatprep.subr.mxu0 0.0
    %1372 = vmatpush1.msra.mxu0 0.0
    %1373 = vmatprep.subr.mxu0 0.0
    %1374 = vmatpush1.msra.mxu0 0.0
    %1375 = vmatprep.subr.mxu0 0.0
    %1376 = vmatpush1.msra.mxu0 0.0
    %1377 = vmatprep.subr.mxu0 0.0
    %1378 = vmatpush1.msra.mxu0 0.0
    %1379 = vmatprep.subr.mxu0 0.0
    %1380 = vmatpush1.msra.mxu0 0.0
    %1381 = vmatprep.subr.mxu0 0.0
    %1382 = vmatpush1.msra.mxu0 0.0
    %1383 = vmatprep.subr.mxu0 0.0
    %1384 = vmatpush1.msra.mxu0 0.0
    %1385 = vmatprep.subr.mxu0 0.0
    %1386 = vmatpush1.msra.mxu0 0.0
    %1387 = vmatprep.subr.mxu0 0.0
    %1388 = vmatpush1.msra.mxu0 0.0
    %1389 = vmatprep.subr.mxu0 0.0
    %1390 = vmatpush1.msra.mxu0 0.0
    %1391 = vmatprep.subr.mxu0 0.0
    %1392 = vmatpush1.msra.mxu0 0.0
    %1393 = vmatprep.subr.mxu0 0.0
    %1394 = vmatpush1.msra.mxu0 0.0
    %1395 = vmatprep.subr.mxu0 0.0
    %1396 = vmatpush1.msra.mxu0 0.0
    %1397 = vmatprep.subr.mxu0 0.0
    %1398 = vmatpush1.msra.mxu0 0.0
    %1399 = vmatprep.subr.mxu0 0.0
    %1400 = vmatpush1.msra.mxu0 0.0
    %1401 = vmatprep.subr.mxu0 0.0
    %1402 = vmatpush1.msra.mxu0 0.0
    %1403 = vmatprep.subr.mxu0 0.0
    %1404 = vmatpush1.msra.mxu0 0.0
    %1405 = vmatprep.subr.mxu0 0.0
    %1406 = vmatpush1.msra.mxu0 0.0
    %1407 = vmatprep.subr.mxu0 0.0
    %1408 = vmatpush1.msra.mxu0 0.0
    %1409 = vmatprep.subr.mxu0 0.0
    %1410 = vmatpush1.msra.mxu0 0.0
    %1411 = vmatprep.subr.mxu0 0.0
    %1412 = vmatpush1.msra.mxu0 0.0
    %1413 = vmatprep.subr.mxu0 0.0
    %1414 = vmatpush1.msra.mxu0 0.0
    %1415 = vmatprep.mubr.f32.mxu0 0.0
    %1416 = vmatmul.mubr.f32.gmra.mrb[0].mxu0 %v1340
    %v1417 = vpop.f32.mrb[0].mxu0
    %v1418 = vadd.f32 0.0, %v1417
    %v1419 = vpop.f32.mrb[0].mxu0
    %v1420 = vadd.f32 0.0, %v1419
    %1421 = vmatprep.mubr.f32.mxu0 0.0
    %1422 = vmatmul.mubr.f32.gmra.mrb[0].mxu0 %v1343
    %v1423 = vpop.f32.mrb[0].mxu0
    %v1424 = vadd.f32 0.0, %v1423
    %v1425 = vpop.f32.mrb[0].mxu0
    %v1426 = vadd.f32 0.0, %v1425
    %1427 = vmatprep.mubr.f32.mxu0 0.0
    %1428 = vmatmul.mubr.f32.gmra.mrb[0].mxu0 %v1346
    %v1429 = vpop.f32.mrb[0].mxu0
    %v1430 = vadd.f32 0.0, %v1429
    %v1431 = vpop.f32.mrb[0].mxu0
    %v1432 = vadd.f32 0.0, %v1431
    %1433 = vmatprep.mubr.f32.mxu0 0.0
    %1434 = vmatmul.mubr.f32.gmra.mrb[0].mxu0 %v1349
    %v1435 = vpop.f32.mrb[0].mxu0
    %v1436 = vadd.f32 0.0, %v1435
    %v1437 = vpop.f32.mrb[0].mxu0
    %v1438 = vadd.f32 0.0, %v1437
    %1439 = vdwg.mxu0
    %1440 = vmatprep.subr.mxu0 %v181
    %1441 = vmatpush1.msra.mxu0 %v180
    %1442 = vmatprep.subr.mxu0 %v189
    %1443 = vmatpush1.msra.mxu0 %v188
    %1444 = vmatprep.subr.mxu0 %v197
    %1445 = vmatpush1.msra.mxu0 %v196
    %1446 = vmatprep.subr.mxu0 %v205
    %1447 = vmatpush1.msra.mxu0 %v204
    %1448 = vmatprep.subr.mxu0 0.0
    %1449 = vmatpush1.msra.mxu0 0.0
    %1450 = vmatprep.subr.mxu0 0.0
    %1451 = vmatpush1.msra.mxu0 0.0
    %1452 = vmatprep.subr.mxu0 0.0
    %1453 = vmatpush1.msra.mxu0 0.0
    %1454 = vmatprep.subr.mxu0 0.0
    %1455 = vmatpush1.msra.mxu0 0.0
    %1456 = vmatprep.subr.mxu0 0.0
    %1457 = vmatpush1.msra.mxu0 0.0
    %1458 = vmatprep.subr.mxu0 0.0
    %1459 = vmatpush1.msra.mxu0 0.0
    %1460 = vmatprep.subr.mxu0 0.0
    %1461 = vmatpush1.msra.mxu0 0.0
    %1462 = vmatprep.subr.mxu0 0.0
    %1463 = vmatpush1.msra.mxu0 0.0
    %1464 = vmatprep.subr.mxu0 0.0
    %1465 = vmatpush1.msra.mxu0 0.0
    %1466 = vmatprep.subr.mxu0 0.0
    %1467 = vmatpush1.msra.mxu0 0.0
    %1468 = vmatprep.subr.mxu0 0.0
    %1469 = vmatpush1.msra.mxu0 0.0
    %1470 = vmatprep.subr.mxu0 0.0
    %1471 = vmatpush1.msra.mxu0 0.0
    %1472 = vmatprep.subr.mxu0 0.0
    %1473 = vmatpush1.msra.mxu0 0.0
    %1474 = vmatprep.subr.mxu0 0.0
    %1475 = vmatpush1.msra.mxu0 0.0
    %1476 = vmatprep.subr.mxu0 0.0
    %1477 = vmatpush1.msra.mxu0 0.0
    %1478 = vmatprep.subr.mxu0 0.0
    %1479 = vmatpush1.msra.mxu0 0.0
    %1480 = vmatprep.subr.mxu0 0.0
    %1481 = vmatpush1.msra.mxu0 0.0
    %1482 = vmatprep.subr.mxu0 0.0
    %1483 = vmatpush1.msra.mxu0 0.0
    %1484 = vmatprep.subr.mxu0 0.0
    %1485 = vmatpush1.msra.mxu0 0.0
    %1486 = vmatprep.subr.mxu0 0.0
    %1487 = vmatpush1.msra.mxu0 0.0
    %1488 = vmatprep.subr.mxu0 0.0
    %1489 = vmatpush1.msra.mxu0 0.0
    %1490 = vmatprep.subr.mxu0 0.0
    %1491 = vmatpush1.msra.mxu0 0.0
    %1492 = vmatprep.subr.mxu0 0.0
    %1493 = vmatpush1.msra.mxu0 0.0
    %1494 = vmatprep.subr.mxu0 0.0
    %1495 = vmatpush1.msra.mxu0 0.0
    %1496 = vmatprep.subr.mxu0 0.0
    %1497 = vmatpush1.msra.mxu0 0.0
    %1498 = vmatprep.subr.mxu0 0.0
    %1499 = vmatpush1.msra.mxu0 0.0
    %1500 = vmatprep.subr.mxu0 0.0
    %1501 = vmatpush1.msra.mxu0 0.0
    %1502 = vmatprep.subr.mxu0 0.0
    %1503 = vmatpush1.msra.mxu0 0.0
    %1504 = vmatprep.mubr.f32.mxu0 0.0
    %1505 = vmatmul.mubr.f32.gmra.mrb[0].mxu0 %v1340
    %v1506 = vpop.f32.mrb[0].mxu0
    %v1507 = vadd.f32 0.0, %v1506
    %v1508 = vpop.f32.mrb[0].mxu0
    %v1509 = vadd.f32 0.0, %v1508
    %1510 = vmatprep.mubr.f32.mxu0 0.0
    %1511 = vmatmul.mubr.f32.gmra.mrb[0].mxu0 %v1343
    %v1512 = vpop.f32.mrb[0].mxu0
    %v1513 = vadd.f32 0.0, %v1512
    %v1514 = vpop.f32.mrb[0].mxu0
    %v1515 = vadd.f32 0.0, %v1514
    %1516 = vmatprep.mubr.f32.mxu0 0.0
    %1517 = vmatmul.mubr.f32.gmra.mrb[0].mxu0 %v1346
    %v1518 = vpop.f32.mrb[0].mxu0
    %v1519 = vadd.f32 0.0, %v1518
    %v1520 = vpop.f32.mrb[0].mxu0
    %v1521 = vadd.f32 0.0, %v1520
    %1522 = vmatprep.mubr.f32.mxu0 0.0
    %1523 = vmatmul.mubr.f32.gmra.mrb[0].mxu0 %v1349
    %v1524 = vpop.f32.mrb[0].mxu0
    %v1525 = vadd.f32 0.0, %v1524
    %v1526 = vpop.f32.mrb[0].mxu0
    %v1527 = vadd.f32 0.0, %v1526
    %1528 = vdwg.mxu0
    %1529 = vmatprep.subr.mxu0 %v183
    %1530 = vmatpush1.msra.mxu0 %v182
    %1531 = vmatprep.subr.mxu0 %v191
    %1532 = vmatpush1.msra.mxu0 %v190
    %1533 = vmatprep.subr.mxu0 %v199
    %1534 = vmatpush1.msra.mxu0 %v198
    %1535 = vmatprep.subr.mxu0 %v207
    %1536 = vmatpush1.msra.mxu0 %v206
    %1537 = vmatprep.subr.mxu0 0.0
    %1538 = vmatpush1.msra.mxu0 0.0
    %1539 = vmatprep.subr.mxu0 0.0
    %1540 = vmatpush1.msra.mxu0 0.0
    %1541 = vmatprep.subr.mxu0 0.0
    %1542 = vmatpush1.msra.mxu0 0.0
    %1543 = vmatprep.subr.mxu0 0.0
    %1544 = vmatpush1.msra.mxu0 0.0
    %1545 = vmatprep.subr.mxu0 0.0
    %1546 = vmatpush1.msra.mxu0 0.0
    %1547 = vmatprep.subr.mxu0 0.0
    %1548 = vmatpush1.msra.mxu0 0.0
    %1549 = vmatprep.subr.mxu0 0.0
    %1550 = vmatpush1.msra.mxu0 0.0
    %1551 = vmatprep.subr.mxu0 0.0
    %1552 = vmatpush1.msra.mxu0 0.0
    %1553 = vmatprep.subr.mxu0 0.0
    %1554 = vmatpush1.msra.mxu0 0.0
    %1555 = vmatprep.subr.mxu0 0.0
    %1556 = vmatpush1.msra.mxu0 0.0
    %1557 = vmatprep.subr.mxu0 0.0
    %1558 = vmatpush1.msra.mxu0 0.0
    %1559 = vmatprep.subr.mxu0 0.0
    %1560 = vmatpush1.msra.mxu0 0.0
    %1561 = vmatprep.subr.mxu0 0.0
    %1562 = vmatpush1.msra.mxu0 0.0
    %1563 = vmatprep.subr.mxu0 0.0
    %1564 = vmatpush1.msra.mxu0 0.0
    %1565 = vmatprep.subr.mxu0 0.0
    %1566 = vmatpush1.msra.mxu0 0.0
    %1567 = vmatprep.subr.mxu0 0.0
    %1568 = vmatpush1.msra.mxu0 0.0
    %1569 = vmatprep.subr.mxu0 0.0
    %1570 = vmatpush1.msra.mxu0 0.0
    %1571 = vmatprep.subr.mxu0 0.0
    %1572 = vmatpush1.msra.mxu0 0.0
    %1573 = vmatprep.subr.mxu0 0.0
    %1574 = vmatpush1.msra.mxu0 0.0
    %1575 = vmatprep.subr.mxu0 0.0
    %1576 = vmatpush1.msra.mxu0 0.0
    %1577 = vmatprep.subr.mxu0 0.0
    %1578 = vmatpush1.msra.mxu0 0.0
    %1579 = vmatprep.subr.mxu0 0.0
    %1580 = vmatpush1.msra.mxu0 0.0
    %1581 = vmatprep.subr.mxu0 0.0
    %1582 = vmatpush1.msra.mxu0 0.0
    %1583 = vmatprep.subr.mxu0 0.0
    %1584 = vmatpush1.msra.mxu0 0.0
    %1585 = vmatprep.subr.mxu0 0.0
    %1586 = vmatpush1.msra.mxu0 0.0
    %1587 = vmatprep.subr.mxu0 0.0
    %1588 = vmatpush1.msra.mxu0 0.0
    %1589 = vmatprep.subr.mxu0 0.0
    %1590 = vmatpush1.msra.mxu0 0.0
    %1591 = vmatprep.subr.mxu0 0.0
    %1592 = vmatpush1.msra.mxu0 0.0
    %1593 = vmatprep.mubr.f32.mxu0 0.0
    %1594 = vmatmul.mubr.f32.gmra.mrb[0].mxu0 %v1340
    %v1595 = vpop.f32.mrb[0].mxu0
    %v1596 = vadd.f32 0.0, %v1595
    %v1597 = vpop.f32.mrb[0].mxu0
    %v1598 = vadd.f32 0.0, %v1597
    %1599 = vmatprep.mubr.f32.mxu0 0.0
    %1600 = vmatmul.mubr.f32.gmra.mrb[0].mxu0 %v1343
    %v1601 = vpop.f32.mrb[0].mxu0
    %v1602 = vadd.f32 0.0, %v1601
    %v1603 = vpop.f32.mrb[0].mxu0
    %v1604 = vadd.f32 0.0, %v1603
    %1605 = vmatprep.mubr.f32.mxu0 0.0
    %1606 = vmatmul.mubr.f32.gmra.mrb[0].mxu0 %v1346
    %v1607 = vpop.f32.mrb[0].mxu0
    %v1608 = vadd.f32 0.0, %v1607
    %v1609 = vpop.f32.mrb[0].mxu0
    %v1610 = vadd.f32 0.0, %v1609
    %1611 = vmatprep.mubr.f32.mxu0 0.0
    %1612 = vmatmul.mubr.f32.gmra.mrb[0].mxu0 %v1349
    %v1613 = vpop.f32.mrb[0].mxu0
    %v1614 = vadd.f32 0.0, %v1613
    %v1615 = vpop.f32.mrb[0].mxu0
    %v1616 = vadd.f32 0.0, %v1615
    %1617 = vdwg.mxu0
    %1618 = vmatprep.subr.mxu0 %v185
    %1619 = vmatpush1.msra.mxu0 %v184
    %1620 = vmatprep.subr.mxu0 %v193
    %1621 = vmatpush1.msra.mxu0 %v192
    %1622 = vmatprep.subr.mxu0 %v201
    %1623 = vmatpush1.msra.mxu0 %v200
    %1624 = vmatprep.subr.mxu0 %v209
    %1625 = vmatpush1.msra.mxu0 %v208
    %1626 = vmatprep.subr.mxu0 0.0
    %1627 = vmatpush1.msra.mxu0 0.0
    %1628 = vmatprep.subr.mxu0 0.0
    %1629 = vmatpush1.msra.mxu0 0.0
    %1630 = vmatprep.subr.mxu0 0.0
    %1631 = vmatpush1.msra.mxu0 0.0
    %1632 = vmatprep.subr.mxu0 0.0
    %1633 = vmatpush1.msra.mxu0 0.0
    %1634 = vmatprep.subr.mxu0 0.0
    %1635 = vmatpush1.msra.mxu0 0.0
    %1636 = vmatprep.subr.mxu0 0.0
    %1637 = vmatpush1.msra.mxu0 0.0
    %1638 = vmatprep.subr.mxu0 0.0
    %1639 = vmatpush1.msra.mxu0 0.0
    %1640 = vmatprep.subr.mxu0 0.0
    %1641 = vmatpush1.msra.mxu0 0.0
    %1642 = vmatprep.subr.mxu0 0.0
    %1643 = vmatpush1.msra.mxu0 0.0
    %1644 = vmatprep.subr.mxu0 0.0
    %1645 = vmatpush1.msra.mxu0 0.0
    %1646 = vmatprep.subr.mxu0 0.0
    %1647 = vmatpush1.msra.mxu0 0.0
    %1648 = vmatprep.subr.mxu0 0.0
    %1649 = vmatpush1.msra.mxu0 0.0
    %1650 = vmatprep.subr.mxu0 0.0
    %1651 = vmatpush1.msra.mxu0 0.0
    %1652 = vmatprep.subr.mxu0 0.0
    %1653 = vmatpush1.msra.mxu0 0.0
    %1654 = vmatprep.subr.mxu0 0.0
    %1655 = vmatpush1.msra.mxu0 0.0
    %1656 = vmatprep.subr.mxu0 0.0
    %1657 = vmatpush1.msra.mxu0 0.0
    %1658 = vmatprep.subr.mxu0 0.0
    %1659 = vmatpush1.msra.mxu0 0.0
    %1660 = vmatprep.subr.mxu0 0.0
    %1661 = vmatpush1.msra.mxu0 0.0
    %1662 = vmatprep.subr.mxu0 0.0
    %1663 = vmatpush1.msra.mxu0 0.0
    %1664 = vmatprep.subr.mxu0 0.0
    %1665 = vmatpush1.msra.mxu0 0.0
    %1666 = vmatprep.subr.mxu0 0.0
    %1667 = vmatpush1.msra.mxu0 0.0
    %1668 = vmatprep.subr.mxu0 0.0
    %1669 = vmatpush1.msra.mxu0 0.0
    %1670 = vmatprep.subr.mxu0 0.0
    %1671 = vmatpush1.msra.mxu0 0.0
    %1672 = vmatprep.subr.mxu0 0.0
    %1673 = vmatpush1.msra.mxu0 0.0
    %1674 = vmatprep.subr.mxu0 0.0
    %1675 = vmatpush1.msra.mxu0 0.0
    %1676 = vmatprep.subr.mxu0 0.0
    %1677 = vmatpush1.msra.mxu0 0.0
    %1678 = vmatprep.subr.mxu0 0.0
    %1679 = vmatpush1.msra.mxu0 0.0
    %1680 = vmatprep.subr.mxu0 0.0
    %1681 = vmatpush1.msra.mxu0 0.0
    %1682 = vmatprep.mubr.f32.mxu0 0.0
    %1683 = vmatmul.mubr.f32.gmra.mrb[0].mxu0 %v1340
    %v1684 = vpop.f32.mrb[0].mxu0
    %v1685 = vadd.f32 0.0, %v1684
    %v1686 = vpop.f32.mrb[0].mxu0
    %v1687 = vadd.f32 0.0, %v1686
    %1688 = vmatprep.mubr.f32.mxu0 0.0
    %1689 = vmatmul.mubr.f32.gmra.mrb[0].mxu0 %v1343
    %v1690 = vpop.f32.mrb[0].mxu0
    %v1691 = vadd.f32 0.0, %v1690
    %v1692 = vpop.f32.mrb[0].mxu0
    %v1693 = vadd.f32 0.0, %v1692
    %1694 = vmatprep.mubr.f32.mxu0 0.0
    %1695 = vmatmul.mubr.f32.gmra.mrb[0].mxu0 %v1346
    %v1696 = vpop.f32.mrb[0].mxu0
    %v1697 = vadd.f32 0.0, %v1696
    %v1698 = vpop.f32.mrb[0].mxu0
    %v1699 = vadd.f32 0.0, %v1698
    %1700 = vmatprep.mubr.f32.mxu0 0.0
    %1701 = vmatmul.mubr.f32.gmra.mrb[0].mxu0 %v1349
    %v1702 = vpop.f32.mrb[0].mxu0
    %v1703 = vadd.f32 0.0, %v1702
    %v1704 = vpop.f32.mrb[0].mxu0
    %v1705 = vadd.f32 0.0, %v1704
    %1706 = vdwg.mxu0
    %v1707 = vld [vmem:[%s1] sm:$0xff]
    %v1708 = vmul.f32 %v18, %v1418
    %v1709 = vmul.f32 %v19, %v1420
    %v1710 = vmul.f32 %v20, %v1507
    %v1711 = vmul.f32 %v21, %v1509
    %v1712 = vmul.f32 %v22, %v1596
    %v1713 = vmul.f32 %v23, %v1598
    %v1714 = vmul.f32 %v24, %v1685
    %v1715 = vmul.f32 %v25, %v1687
    %v1716 = vmul.f32 %v26, %v1424
    %v1717 = vmul.f32 %v27, %v1426
    %v1718 = vmul.f32 %v28, %v1513
    %v1719 = vmul.f32 %v29, %v1515
    %v1720 = vmul.f32 %v30, %v1602
    %v1721 = vmul.f32 %v31, %v1604
    %v1722 = vmul.f32 %v32, %v1691
    %v1723 = vmul.f32 %v33, %v1693
    %v1724 = vmul.f32 %v34, %v1430
    %v1725 = vmul.f32 %v35, %v1432
    %v1726 = vmul.f32 %v36, %v1519
    %v1727 = vmul.f32 %v37, %v1521
    %v1728 = vmul.f32 %v38, %v1608
    %v1729 = vmul.f32 %v39, %v1610
    %v1730 = vmul.f32 %v40, %v1697
    %v1731 = vmul.f32 %v41, %v1699
    %v1732 = vmul.f32 %v42, %v1436
    %v1733 = vmul.f32 %v43, %v1438
    %v1734 = vmul.f32 %v44, %v1525
    %v1735 = vmul.f32 %v45, %v1527
    %v1736 = vmul.f32 %v46, %v1614
    %v1737 = vmul.f32 %v47, %v1616
    %v1738 = vmul.f32 %v48, %v1703
    %v1739 = vmul.f32 %v49, %v1705
    %v1741 = vlaneseq
    %v1742 = vshrl.u32 %v1741, 7
    %v1743 = vsub.s32 0, %v1742
    %v1744 = vrot.slane %v1707, %v1743
    %v1745 = vlaneseq
    %v1746 = vshrl.u32 %v1745, 7
    %v1747 = vsub.s32 1, %v1746
    %v1748 = vrot.slane %v1707, %v1747
    %v1749 = vlaneseq
    %v1750 = vshrl.u32 %v1749, 7
    %v1751 = vsub.s32 2, %v1750
    %v1752 = vrot.slane %v1707, %v1751
    %v1753 = vlaneseq
    %v1754 = vshrl.u32 %v1753, 7
    %v1755 = vsub.s32 3, %v1754
    %v1756 = vrot.slane %v1707, %v1755
    %v1757 = vlaneseq
    %v1758 = vshrl.u32 %v1757, 7
    %v1759 = vsub.s32 4, %v1758
    %v1760 = vrot.slane %v1707, %v1759
    %v1761 = vlaneseq
    %v1762 = vshrl.u32 %v1761, 7
    %v1763 = vsub.s32 5, %v1762
    %v1764 = vrot.slane %v1707, %v1763
    %v1765 = vlaneseq
    %v1766 = vshrl.u32 %v1765, 7
    %v1767 = vsub.s32 6, %v1766
    %v1768 = vrot.slane %v1707, %v1767
    %v1769 = vlaneseq
    %v1770 = vshrl.u32 %v1769, 7
    %v1771 = vsub.s32 7, %v1770
    %v1772 = vrot.slane %v1707, %v1771
    %v1781 = vmul.f32 %v1708, %v1744
    %v1782 = vmul.f32 %v1709, %v1748
    %v1783 = vmul.f32 %v1710, %v1752
    %v1784 = vmul.f32 %v1711, %v1756
    %v1785 = vmul.f32 %v1712, %v1760
    %v1786 = vmul.f32 %v1713, %v1764
    %v1787 = vmul.f32 %v1714, %v1768
    %v1788 = vmul.f32 %v1715, %v1772
    %v1789 = vmul.f32 %v1716, %v1744
    %v1790 = vmul.f32 %v1717, %v1748
    %v1791 = vmul.f32 %v1718, %v1752
    %v1792 = vmul.f32 %v1719, %v1756
    %v1793 = vmul.f32 %v1720, %v1760
    %v1794 = vmul.f32 %v1721, %v1764
    %v1795 = vmul.f32 %v1722, %v1768
    %v1796 = vmul.f32 %v1723, %v1772
    %v1797 = vmul.f32 %v1724, %v1744
    %v1798 = vmul.f32 %v1725, %v1748
    %v1799 = vmul.f32 %v1726, %v1752
    %v1800 = vmul.f32 %v1727, %v1756
    %v1801 = vmul.f32 %v1728, %v1760
    %v1802 = vmul.f32 %v1729, %v1764
    %v1803 = vmul.f32 %v1730, %v1768
    %v1804 = vmul.f32 %v1731, %v1772
    %v1805 = vmul.f32 %v1732, %v1744
    %v1806 = vmul.f32 %v1733, %v1748
    %v1807 = vmul.f32 %v1734, %v1752
    %v1808 = vmul.f32 %v1735, %v1756
    %v1809 = vmul.f32 %v1736, %v1760
    %v1810 = vmul.f32 %v1737, %v1764
    %v1811 = vmul.f32 %v1738, %v1768
    %v1812 = vmul.f32 %v1739, %v1772
    %1813 = vst [vmem:[#allocation2] sm:$0xff] %v1781
    %1814 = vst [vmem:[#allocation2 + $0x8] sm:$0xff] %v1782
    %1815 = vst [vmem:[#allocation2 + $0x10] sm:$0xff] %v1783
    %1816 = vst [vmem:[#allocation2 + $0x18] sm:$0xff] %v1784
    %1817 = vst [vmem:[#allocation2 + $0x20] sm:$0xff] %v1785
    %1818 = vst [vmem:[#allocation2 + $0x28] sm:$0xff] %v1786
    %1819 = vst [vmem:[#allocation2 + $0x30] sm:$0xff] %v1787
    %1820 = vst [vmem:[#allocation2 + $0x38] sm:$0xff] %v1788
    %1821 = vst [vmem:[#allocation2 + $0x40] sm:$0xff] %v1789
    %1822 = vst [vmem:[#allocation2 + $0x48] sm:$0xff] %v1790
    %1823 = vst [vmem:[#allocation2 + $0x50] sm:$0xff] %v1791
    %1824 = vst [vmem:[#allocation2 + $0x58] sm:$0xff] %v1792
    %1825 = vst [vmem:[#allocation2 + $0x60] sm:$0xff] %v1793
    %1826 = vst [vmem:[#allocation2 + $0x68] sm:$0xff] %v1794
    %1827 = vst [vmem:[#allocation2 + $0x70] sm:$0xff] %v1795
    %1828 = vst [vmem:[#allocation2 + $0x78] sm:$0xff] %v1796
    %1829 = vst [vmem:[#allocation2 + $0x80] sm:$0xff] %v1797
    %1830 = vst [vmem:[#allocation2 + $0x88] sm:$0xff] %v1798
    %1831 = vst [vmem:[#allocation2 + $0x90] sm:$0xff] %v1799
    %1832 = vst [vmem:[#allocation2 + $0x98] sm:$0xff] %v1800
    %1833 = vst [vmem:[#allocation2 + $0xa0] sm:$0xff] %v1801
    %1834 = vst [vmem:[#allocation2 + $0xa8] sm:$0xff] %v1802
    %1835 = vst [vmem:[#allocation2 + $0xb0] sm:$0xff] %v1803
    %1836 = vst [vmem:[#allocation2 + $0xb8] sm:$0xff] %v1804
    %1837 = vst [vmem:[#allocation2 + $0xc0] sm:$0xff] %v1805
    %1838 = vst [vmem:[#allocation2 + $0xc8] sm:$0xff] %v1806
    %1839 = vst [vmem:[#allocation2 + $0xd0] sm:$0xff] %v1807
    %1840 = vst [vmem:[#allocation2 + $0xd8] sm:$0xff] %v1808
    %1841 = vst [vmem:[#allocation2 + $0xe0] sm:$0xff] %v1809
    %1842 = vst [vmem:[#allocation2 + $0xe8] sm:$0xff] %v1810
    %1843 = vst [vmem:[#allocation2 + $0xf0] sm:$0xff] %v1811
    %1844 = vst [vmem:[#allocation2 + $0xf8] sm:$0xff] %v1812
    // Predicated region
    $region18: #{tpu_custom_call.1} parent=1 // pred_check
      _
    $region19: #{tpu_custom_call.1} parent=1 // pred_check_branch
      %1846 = sbr.rel (0) target = $region21
    $region20: #{tpu_custom_call.1} parent=1 // pred_region
      %s1848 = ssub.s32 4096, 4096
      %1849 = vsyncadd [#allocation3], %s1848
      %s1850 = sshll.u32 [#allocation2], 4
      %s1851 = int_to_ptr.vmem [resolvable:$true] %s1850
      %1856 = dma.vmem_to_hbm [thread:$0]  %s1851, 4096, %s4, [#allocation3], 1024, 1024, 64
    $region21: #{tpu_custom_call.1} parent=1 // pred_fallthru
      _
    // Predicated region
    $region22: #{tpu_custom_call.1} parent=1 // pred_check
      _
    $region23: #{tpu_custom_call.1} parent=1 // pred_check_branch
      %1858 = sbr.rel (0) target = $region25
    $region24: #{tpu_custom_call.1} parent=1 // pred_region
      %1859 = dma.done [#allocation3], 4096
    $region25: #{tpu_custom_call.1} parent=1 // pred_fallthru
      _
    %1860 = vsyncpa [#allocation3], 1

// kernel: tpu_custom_call.1
$region0: #{tpu_custom_call.1}
  #allocation0 [shape = 'u32[]', space=smem, size = 0x4, offset = 0x4, fixed_abs, tag = 'smem constant byte address 0x4 - core index']
  #allocation1 [shape = 'u32[144,128]{1,0:T(1,128)}', space=vmem, size = 0x12000, scoped, tag = 'internal scratch']
  %s0 = inlined_call_operand.vmem [shape: f32[512,32], index: 0, kind: input, shape index: {}]
  %s1 = inlined_call_operand.vmem [shape: f32[1,32], index: 1, kind: input, shape index: {}]
  %s2 = inlined_call_operand.vmem [shape: f32[512,32], index: 2, kind: output, shape index: {}]
  %s3 = sld [smem:[#allocation0]]
  $region18: #{tpu_custom_call.1} parent=0
    _
  %s5 = ssub.s32 1, %s3
  %s6 = scalar_select 0, %s5, %s3
  // Predicated region
  $region2: #{tpu_custom_call.1} parent=0 // pred_check
    _
  $region3: #{tpu_custom_call.1} parent=0 // pred_check_branch
    %8 = sbr.rel (0) target = $region5
  $region4: #{tpu_custom_call.1} parent=0 // pred_region
    _
  $region5: #{tpu_custom_call.1} parent=0 // pred_fallthru
    _
  // Predicated region
  $region6: #{tpu_custom_call.1} parent=0 // pred_check
    _
  $region7: #{tpu_custom_call.1} parent=0 // pred_check_branch
    %10 = sbr.rel (0) target = $region9
  $region8: #{tpu_custom_call.1} parent=0 // pred_region
    _
  $region9: #{tpu_custom_call.1} parent=0 // pred_fallthru
    _
  %v11 = vld [vmem:[%s0] sm:$0xff]
  %v12 = vld [vmem:[%s0 + $0x8] sm:$0xff]
  %v13 = vld [vmem:[%s0 + $0x10] sm:$0xff]
  %v14 = vld [vmem:[%s0 + $0x18] sm:$0xff]
  %v15 = vld [vmem:[%s0 + $0x20] sm:$0xff]
  %v16 = vld [vmem:[%s0 + $0x28] sm:$0xff]
  %v17 = vld [vmem:[%s0 + $0x30] sm:$0xff]
  %v18 = vld [vmem:[%s0 + $0x38] sm:$0xff]
  %v19 = vld [vmem:[%s0 + $0x40] sm:$0xff]
  %v20 = vld [vmem:[%s0 + $0x48] sm:$0xff]
  %v21 = vld [vmem:[%s0 + $0x50] sm:$0xff]
  %v22 = vld [vmem:[%s0 + $0x58] sm:$0xff]
  %v23 = vld [vmem:[%s0 + $0x60] sm:$0xff]
  %v24 = vld [vmem:[%s0 + $0x68] sm:$0xff]
  %v25 = vld [vmem:[%s0 + $0x70] sm:$0xff]
  %v26 = vld [vmem:[%s0 + $0x78] sm:$0xff]
  %v27 = vld [vmem:[%s0 + $0x80] sm:$0xff]
  %v28 = vld [vmem:[%s0 + $0x88] sm:$0xff]
  %v29 = vld [vmem:[%s0 + $0x90] sm:$0xff]
  %v30 = vld [vmem:[%s0 + $0x98] sm:$0xff]
  %v31 = vld [vmem:[%s0 + $0xa0] sm:$0xff]
  %v32 = vld [vmem:[%s0 + $0xa8] sm:$0xff]
  %v33 = vld [vmem:[%s0 + $0xb0] sm:$0xff]
  %v34 = vld [vmem:[%s0 + $0xb8] sm:$0xff]
  %v35 = vld [vmem:[%s0 + $0xc0] sm:$0xff]
  %v36 = vld [vmem:[%s0 + $0xc8] sm:$0xff]
  %v37 = vld [vmem:[%s0 + $0xd0] sm:$0xff]
  %v38 = vld [vmem:[%s0 + $0xd8] sm:$0xff]
  %v39 = vld [vmem:[%s0 + $0xe0] sm:$0xff]
  %v40 = vld [vmem:[%s0 + $0xe8] sm:$0xff]
  %v41 = vld [vmem:[%s0 + $0xf0] sm:$0xff]
  %v42 = vld [vmem:[%s0 + $0xf8] sm:$0xff]
  %v43 = vld [vmem:[%s0 + $0x100] sm:$0xff]
  %v44 = vld [vmem:[%s0 + $0x108] sm:$0xff]
  %v45 = vld [vmem:[%s0 + $0x110] sm:$0xff]
  %v46 = vld [vmem:[%s0 + $0x118] sm:$0xff]
  %v47 = vld [vmem:[%s0 + $0x120] sm:$0xff]
  %v48 = vld [vmem:[%s0 + $0x128] sm:$0xff]
  %v49 = vld [vmem:[%s0 + $0x130] sm:$0xff]
  %v50 = vld [vmem:[%s0 + $0x138] sm:$0xff]
  %v51 = vld [vmem:[%s0 + $0x140] sm:$0xff]
  %v52 = vld [vmem:[%s0 + $0x148] sm:$0xff]
  %v53 = vld [vmem:[%s0 + $0x150] sm:$0xff]
  %v54 = vld [vmem:[%s0 + $0x158] sm:$0xff]
  %v55 = vld [vmem:[%s0 + $0x160] sm:$0xff]
  %v56 = vld [vmem:[%s0 + $0x168] sm:$0xff]
  %v57 = vld [vmem:[%s0 + $0x170] sm:$0xff]
  %v58 = vld [vmem:[%s0 + $0x178] sm:$0xff]
  %v59 = vld [vmem:[%s0 + $0x180] sm:$0xff]
  %v60 = vld [vmem:[%s0 + $0x188] sm:$0xff]
  %v61 = vld [vmem:[%s0 + $0x190] sm:$0xff]
  %v62 = vld [vmem:[%s0 + $0x198] sm:$0xff]
  %v63 = vld [vmem:[%s0 + $0x1a0] sm:$0xff]
  %v64 = vld [vmem:[%s0 + $0x1a8] sm:$0xff]
  %v65 = vld [vmem:[%s0 + $0x1b0] sm:$0xff]
  %v66 = vld [vmem:[%s0 + $0x1b8] sm:$0xff]
  %v67 = vld [vmem:[%s0 + $0x1c0] sm:$0xff]
  %v68 = vld [vmem:[%s0 + $0x1c8] sm:$0xff]
  %v69 = vld [vmem:[%s0 + $0x1d0] sm:$0xff]
  %v70 = vld [vmem:[%s0 + $0x1d8] sm:$0xff]
  %v71 = vld [vmem:[%s0 + $0x1e0] sm:$0xff]
  %v72 = vld [vmem:[%s0 + $0x1e8] sm:$0xff]
  %v73 = vld [vmem:[%s0 + $0x1f0] sm:$0xff]
  %v74 = vld [vmem:[%s0 + $0x1f8] sm:$0xff]
  %vm75 = vcmask 261120
  %v76 = vsel %vm75, %v11, 0.0
  %77 = vadd.xlane.f32.xlu0 %v76
  %v78 = vpop.xlane.xlu0 %77
  %v79 = vsel %vm75, %v12, 0.0
  %80 = vadd.xlane.f32.xlu0 %v79
  %v81 = vpop.xlane.xlu0 %80
  %v82 = vsel %vm75, %v13, 0.0
  %83 = vadd.xlane.f32.xlu0 %v82
  %v84 = vpop.xlane.xlu0 %83
  %v85 = vsel %vm75, %v14, 0.0
  %86 = vadd.xlane.f32.xlu0 %v85
  %v87 = vpop.xlane.xlu0 %86
  %v88 = vsel %vm75, %v15, 0.0
  %89 = vadd.xlane.f32.xlu0 %v88
  %v90 = vpop.xlane.xlu0 %89
  %v91 = vsel %vm75, %v16, 0.0
  %92 = vadd.xlane.f32.xlu0 %v91
  %v93 = vpop.xlane.xlu0 %92
  %v94 = vsel %vm75, %v17, 0.0
  %95 = vadd.xlane.f32.xlu0 %v94
  %v96 = vpop.xlane.xlu0 %95
  %v97 = vsel %vm75, %v18, 0.0
  %98 = vadd.xlane.f32.xlu0 %v97
  %v99 = vpop.xlane.xlu0 %98
  %v100 = vsel %vm75, %v19, 0.0
  %101 = vadd.xlane.f32.xlu0 %v100
  %v102 = vpop.xlane.xlu0 %101
  %v103 = vsel %vm75, %v20, 0.0
  %104 = vadd.xlane.f32.xlu0 %v103
  %v105 = vpop.xlane.xlu0 %104
  %v106 = vsel %vm75, %v21, 0.0
  %107 = vadd.xlane.f32.xlu0 %v106
  %v108 = vpop.xlane.xlu0 %107
  %v109 = vsel %vm75, %v22, 0.0
  %110 = vadd.xlane.f32.xlu0 %v109
  %v111 = vpop.xlane.xlu0 %110
  %v112 = vsel %vm75, %v23, 0.0
  %113 = vadd.xlane.f32.xlu0 %v112
  %v114 = vpop.xlane.xlu0 %113
  %v115 = vsel %vm75, %v24, 0.0
  %116 = vadd.xlane.f32.xlu0 %v115
  %v117 = vpop.xlane.xlu0 %116
  %v118 = vsel %vm75, %v25, 0.0
  %119 = vadd.xlane.f32.xlu0 %v118
  %v120 = vpop.xlane.xlu0 %119
  %v121 = vsel %vm75, %v26, 0.0
  %122 = vadd.xlane.f32.xlu0 %v121
  %v123 = vpop.xlane.xlu0 %122
  %v124 = vsel %vm75, %v27, 0.0
  %125 = vadd.xlane.f32.xlu0 %v124
  %v126 = vpop.xlane.xlu0 %125
  %v127 = vsel %vm75, %v28, 0.0
  %128 = vadd.xlane.f32.xlu0 %v127
  %v129 = vpop.xlane.xlu0 %128
  %v130 = vsel %vm75, %v29, 0.0
  %131 = vadd.xlane.f32.xlu0 %v130
  %v132 = vpop.xlane.xlu0 %131
  %v133 = vsel %vm75, %v30, 0.0
  %134 = vadd.xlane.f32.xlu0 %v133
  %v135 = vpop.xlane.xlu0 %134
  %v136 = vsel %vm75, %v31, 0.0
  %137 = vadd.xlane.f32.xlu0 %v136
  %v138 = vpop.xlane.xlu0 %137
  %v139 = vsel %vm75, %v32, 0.0
  %140 = vadd.xlane.f32.xlu0 %v139
  %v141 = vpop.xlane.xlu0 %140
  %v142 = vsel %vm75, %v33, 0.0
  %143 = vadd.xlane.f32.xlu0 %v142
  %v144 = vpop.xlane.xlu0 %143
  %v145 = vsel %vm75, %v34, 0.0
  %146 = vadd.xlane.f32.xlu0 %v145
  %v147 = vpop.xlane.xlu0 %146
  %v148 = vsel %vm75, %v35, 0.0
  %149 = vadd.xlane.f32.xlu0 %v148
  %v150 = vpop.xlane.xlu0 %149
  %v151 = vsel %vm75, %v36, 0.0
  %152 = vadd.xlane.f32.xlu0 %v151
  %v153 = vpop.xlane.xlu0 %152
  %v154 = vsel %vm75, %v37, 0.0
  %155 = vadd.xlane.f32.xlu0 %v154
  %v156 = vpop.xlane.xlu0 %155
  %v157 = vsel %vm75, %v38, 0.0
  %158 = vadd.xlane.f32.xlu0 %v157
  %v159 = vpop.xlane.xlu0 %158
  %v160 = vsel %vm75, %v39, 0.0
  %161 = vadd.xlane.f32.xlu0 %v160
  %v162 = vpop.xlane.xlu0 %161
  %v163 = vsel %vm75, %v40, 0.0
  %164 = vadd.xlane.f32.xlu0 %v163
  %v165 = vpop.xlane.xlu0 %164
  %v166 = vsel %vm75, %v41, 0.0
  %167 = vadd.xlane.f32.xlu0 %v166
  %v168 = vpop.xlane.xlu0 %167
  %v169 = vsel %vm75, %v42, 0.0
  %170 = vadd.xlane.f32.xlu0 %v169
  %v171 = vpop.xlane.xlu0 %170
  %v172 = vsel %vm75, %v43, 0.0
  %173 = vadd.xlane.f32.xlu0 %v172
  %v174 = vpop.xlane.xlu0 %173
  %v175 = vsel %vm75, %v44, 0.0
  %176 = vadd.xlane.f32.xlu0 %v175
  %v177 = vpop.xlane.xlu0 %176
  %v178 = vsel %vm75, %v45, 0.0
  %179 = vadd.xlane.f32.xlu0 %v178
  %v180 = vpop.xlane.xlu0 %179
  %v181 = vsel %vm75, %v46, 0.0
  %182 = vadd.xlane.f32.xlu0 %v181
  %v183 = vpop.xlane.xlu0 %182
  %v184 = vsel %vm75, %v47, 0.0
  %185 = vadd.xlane.f32.xlu0 %v184
  %v186 = vpop.xlane.xlu0 %185
  %v187 = vsel %vm75, %v48, 0.0
  %188 = vadd.xlane.f32.xlu0 %v187
  %v189 = vpop.xlane.xlu0 %188
  %v190 = vsel %vm75, %v49, 0.0
  %191 = vadd.xlane.f32.xlu0 %v190
  %v192 = vpop.xlane.xlu0 %191
  %v193 = vsel %vm75, %v50, 0.0
  %194 = vadd.xlane.f32.xlu0 %v193
  %v195 = vpop.xlane.xlu0 %194
  %v196 = vsel %vm75, %v51, 0.0
  %197 = vadd.xlane.f32.xlu0 %v196
  %v198 = vpop.xlane.xlu0 %197
  %v199 = vsel %vm75, %v52, 0.0
  %200 = vadd.xlane.f32.xlu0 %v199
  %v201 = vpop.xlane.xlu0 %200
  %v202 = vsel %vm75, %v53, 0.0
  %203 = vadd.xlane.f32.xlu0 %v202
  %v204 = vpop.xlane.xlu0 %203
  %v205 = vsel %vm75, %v54, 0.0
  %206 = vadd.xlane.f32.xlu0 %v205
  %v207 = vpop.xlane.xlu0 %206
  %v208 = vsel %vm75, %v55, 0.0
  %209 = vadd.xlane.f32.xlu0 %v208
  %v210 = vpop.xlane.xlu0 %209
  %v211 = vsel %vm75, %v56, 0.0
  %212 = vadd.xlane.f32.xlu0 %v211
  %v213 = vpop.xlane.xlu0 %212
  %v214 = vsel %vm75, %v57, 0.0
  %215 = vadd.xlane.f32.xlu0 %v214
  %v216 = vpop.xlane.xlu0 %215
  %v217 = vsel %vm75, %v58, 0.0
  %218 = vadd.xlane.f32.xlu0 %v217
  %v219 = vpop.xlane.xlu0 %218
  %v220 = vsel %vm75, %v59, 0.0
  %221 = vadd.xlane.f32.xlu0 %v220
  %v222 = vpop.xlane.xlu0 %221
  %v223 = vsel %vm75, %v60, 0.0
  %224 = vadd.xlane.f32.xlu0 %v223
  %v225 = vpop.xlane.xlu0 %224
  %v226 = vsel %vm75, %v61, 0.0
  %227 = vadd.xlane.f32.xlu0 %v226
  %v228 = vpop.xlane.xlu0 %227
  %v229 = vsel %vm75, %v62, 0.0
  %230 = vadd.xlane.f32.xlu0 %v229
  %v231 = vpop.xlane.xlu0 %230
  %v232 = vsel %vm75, %v63, 0.0
  %233 = vadd.xlane.f32.xlu0 %v232
  %v234 = vpop.xlane.xlu0 %233
  %v235 = vsel %vm75, %v64, 0.0
  %236 = vadd.xlane.f32.xlu0 %v235
  %v237 = vpop.xlane.xlu0 %236
  %v238 = vsel %vm75, %v65, 0.0
  %239 = vadd.xlane.f32.xlu0 %v238
  %v240 = vpop.xlane.xlu0 %239
  %v241 = vsel %vm75, %v66, 0.0
  %242 = vadd.xlane.f32.xlu0 %v241
  %v243 = vpop.xlane.xlu0 %242
  %v244 = vsel %vm75, %v67, 0.0
  %245 = vadd.xlane.f32.xlu0 %v244
  %v246 = vpop.xlane.xlu0 %245
  %v247 = vsel %vm75, %v68, 0.0
  %248 = vadd.xlane.f32.xlu0 %v247
  %v249 = vpop.xlane.xlu0 %248
  %v250 = vsel %vm75, %v69, 0.0
  %251 = vadd.xlane.f32.xlu0 %v250
  %v252 = vpop.xlane.xlu0 %251
  %v253 = vsel %vm75, %v70, 0.0
  %254 = vadd.xlane.f32.xlu0 %v253
  %v255 = vpop.xlane.xlu0 %254
  %v256 = vsel %vm75, %v71, 0.0
  %257 = vadd.xlane.f32.xlu0 %v256
  %v258 = vpop.xlane.xlu0 %257
  %v259 = vsel %vm75, %v72, 0.0
  %260 = vadd.xlane.f32.xlu0 %v259
  %v261 = vpop.xlane.xlu0 %260
  %v262 = vsel %vm75, %v73, 0.0
  %263 = vadd.xlane.f32.xlu0 %v262
  %v264 = vpop.xlane.xlu0 %263
  %v265 = vsel %vm75, %v74, 0.0
  %266 = vadd.xlane.f32.xlu0 %v265
  %v267 = vpop.xlane.xlu0 %266
  %v268 = vmul.f32 %v78, 0.03125
  %v269 = vmul.f32 %v81, 0.03125
  %v270 = vmul.f32 %v84, 0.03125
  %v271 = vmul.f32 %v87, 0.03125
  %v272 = vmul.f32 %v90, 0.03125
  %v273 = vmul.f32 %v93, 0.03125
  %v274 = vmul.f32 %v96, 0.03125
  %v275 = vmul.f32 %v99, 0.03125
  %v276 = vmul.f32 %v102, 0.03125
  %v277 = vmul.f32 %v105, 0.03125
  %v278 = vmul.f32 %v108, 0.03125
  %v279 = vmul.f32 %v111, 0.03125
  %v280 = vmul.f32 %v114, 0.03125
  %v281 = vmul.f32 %v117, 0.03125
  %v282 = vmul.f32 %v120, 0.03125
  %v283 = vmul.f32 %v123, 0.03125
  %v284 = vmul.f32 %v126, 0.03125
  %v285 = vmul.f32 %v129, 0.03125
  %v286 = vmul.f32 %v132, 0.03125
  %v287 = vmul.f32 %v135, 0.03125
  %v288 = vmul.f32 %v138, 0.03125
  %v289 = vmul.f32 %v141, 0.03125
  %v290 = vmul.f32 %v144, 0.03125
  %v291 = vmul.f32 %v147, 0.03125
  %v292 = vmul.f32 %v150, 0.03125
  %v293 = vmul.f32 %v153, 0.03125
  %v294 = vmul.f32 %v156, 0.03125
  %v295 = vmul.f32 %v159, 0.03125
  %v296 = vmul.f32 %v162, 0.03125
  %v297 = vmul.f32 %v165, 0.03125
  %v298 = vmul.f32 %v168, 0.03125
  %v299 = vmul.f32 %v171, 0.03125
  %v300 = vmul.f32 %v174, 0.03125
  %v301 = vmul.f32 %v177, 0.03125
  %v302 = vmul.f32 %v180, 0.03125
  %v303 = vmul.f32 %v183, 0.03125
  %v304 = vmul.f32 %v186, 0.03125
  %v305 = vmul.f32 %v189, 0.03125
  %v306 = vmul.f32 %v192, 0.03125
  %v307 = vmul.f32 %v195, 0.03125
  %v308 = vmul.f32 %v198, 0.03125
  %v309 = vmul.f32 %v201, 0.03125
  %v310 = vmul.f32 %v204, 0.03125
  %v311 = vmul.f32 %v207, 0.03125
  %v312 = vmul.f32 %v210, 0.03125
  %v313 = vmul.f32 %v213, 0.03125
  %v314 = vmul.f32 %v216, 0.03125
  %v315 = vmul.f32 %v219, 0.03125
  %v316 = vmul.f32 %v222, 0.03125
  %v317 = vmul.f32 %v225, 0.03125
  %v318 = vmul.f32 %v228, 0.03125
  %v319 = vmul.f32 %v231, 0.03125
  %v320 = vmul.f32 %v234, 0.03125
  %v321 = vmul.f32 %v237, 0.03125
  %v322 = vmul.f32 %v240, 0.03125
  %v323 = vmul.f32 %v243, 0.03125
  %v324 = vmul.f32 %v246, 0.03125
  %v325 = vmul.f32 %v249, 0.03125
  %v326 = vmul.f32 %v252, 0.03125
  %v327 = vmul.f32 %v255, 0.03125
  %v328 = vmul.f32 %v258, 0.03125
  %v329 = vmul.f32 %v261, 0.03125
  %v330 = vmul.f32 %v264, 0.03125
  %v331 = vmul.f32 %v267, 0.03125
  %v332 = vsub.f32 %v11, %v268
  %v333 = vsub.f32 %v12, %v269
  %v334 = vsub.f32 %v13, %v270
  %v335 = vsub.f32 %v14, %v271
  %v336 = vsub.f32 %v15, %v272
  %v337 = vsub.f32 %v16, %v273
  %v338 = vsub.f32 %v17, %v274
  %v339 = vsub.f32 %v18, %v275
  %v340 = vsub.f32 %v19, %v276
  %v341 = vsub.f32 %v20, %v277
  %v342 = vsub.f32 %v21, %v278
  %v343 = vsub.f32 %v22, %v279
  %v344 = vsub.f32 %v23, %v280
  %v345 = vsub.f32 %v24, %v281
  %v346 = vsub.f32 %v25, %v282
  %v347 = vsub.f32 %v26, %v283
  %v348 = vsub.f32 %v27, %v284
  %v349 = vsub.f32 %v28, %v285
  %v350 = vsub.f32 %v29, %v286
  %v351 = vsub.f32 %v30, %v287
  %v352 = vsub.f32 %v31, %v288
  %v353 = vsub.f32 %v32, %v289
  %v354 = vsub.f32 %v33, %v290
  %v355 = vsub.f32 %v34, %v291
  %v356 = vsub.f32 %v35, %v292
  %v357 = vsub.f32 %v36, %v293
  %v358 = vsub.f32 %v37, %v294
  %v359 = vsub.f32 %v38, %v295
  %v360 = vsub.f32 %v39, %v296
  %v361 = vsub.f32 %v40, %v297
  %v362 = vsub.f32 %v41, %v298
  %v363 = vsub.f32 %v42, %v299
  %v364 = vsub.f32 %v43, %v300
  %v365 = vsub.f32 %v44, %v301
  %v366 = vsub.f32 %v45, %v302
  %v367 = vsub.f32 %v46, %v303
  %v368 = vsub.f32 %v47, %v304
  %v369 = vsub.f32 %v48, %v305
  %v370 = vsub.f32 %v49, %v306
  %v371 = vsub.f32 %v50, %v307
  %v372 = vsub.f32 %v51, %v308
  %v373 = vsub.f32 %v52, %v309
  %v374 = vsub.f32 %v53, %v310
  %v375 = vsub.f32 %v54, %v311
  %v376 = vsub.f32 %v55, %v312
  %v377 = vsub.f32 %v56, %v313
  %v378 = vsub.f32 %v57, %v314
  %v379 = vsub.f32 %v58, %v315
  %v380 = vsub.f32 %v59, %v316
  %v381 = vsub.f32 %v60, %v317
  %v382 = vsub.f32 %v61, %v318
  %v383 = vsub.f32 %v62, %v319
  %v384 = vsub.f32 %v63, %v320
  %v385 = vsub.f32 %v64, %v321
  %v386 = vsub.f32 %v65, %v322
  %v387 = vsub.f32 %v66, %v323
  %v388 = vsub.f32 %v67, %v324
  %v389 = vsub.f32 %v68, %v325
  %v390 = vsub.f32 %v69, %v326
  %v391 = vsub.f32 %v70, %v327
  %v392 = vsub.f32 %v71, %v328
  %v393 = vsub.f32 %v72, %v329
  %v394 = vsub.f32 %v73, %v330
  %v395 = vsub.f32 %v74, %v331
  %v396 = vmul.f32 %v332, %v332
  %v397 = vmul.f32 %v333, %v333
  %v398 = vmul.f32 %v334, %v334
  %v399 = vmul.f32 %v335, %v335
  %v400 = vmul.f32 %v336, %v336
  %v401 = vmul.f32 %v337, %v337
  %v402 = vmul.f32 %v338, %v338
  %v403 = vmul.f32 %v339, %v339
  %v404 = vmul.f32 %v340, %v340
  %v405 = vmul.f32 %v341, %v341
  %v406 = vmul.f32 %v342, %v342
  %v407 = vmul.f32 %v343, %v343
  %v408 = vmul.f32 %v344, %v344
  %v409 = vmul.f32 %v345, %v345
  %v410 = vmul.f32 %v346, %v346
  %v411 = vmul.f32 %v347, %v347
  %v412 = vmul.f32 %v348, %v348
  %v413 = vmul.f32 %v349, %v349
  %v414 = vmul.f32 %v350, %v350
  %v415 = vmul.f32 %v351, %v351
  %v416 = vmul.f32 %v352, %v352
  %v417 = vmul.f32 %v353, %v353
  %v418 = vmul.f32 %v354, %v354
  %v419 = vmul.f32 %v355, %v355
  %v420 = vmul.f32 %v356, %v356
  %v421 = vmul.f32 %v357, %v357
  %v422 = vmul.f32 %v358, %v358
  %v423 = vmul.f32 %v359, %v359
  %v424 = vmul.f32 %v360, %v360
  %v425 = vmul.f32 %v361, %v361
  %v426 = vmul.f32 %v362, %v362
  %v427 = vmul.f32 %v363, %v363
  %v428 = vmul.f32 %v364, %v364
  %v429 = vmul.f32 %v365, %v365
  %v430 = vmul.f32 %v366, %v366
  %v431 = vmul.f32 %v367, %v367
  %v432 = vmul.f32 %v368, %v368
  %v433 = vmul.f32 %v369, %v369
  %v434 = vmul.f32 %v370, %v370
  %v435 = vmul.f32 %v371, %v371
  %v436 = vmul.f32 %v372, %v372
  %v437 = vmul.f32 %v373, %v373
  %v438 = vmul.f32 %v374, %v374
  %v439 = vmul.f32 %v375, %v375
  %v440 = vmul.f32 %v376, %v376
  %v441 = vmul.f32 %v377, %v377
  %v442 = vmul.f32 %v378, %v378
  %v443 = vmul.f32 %v379, %v379
  %v444 = vmul.f32 %v380, %v380
  %v445 = vmul.f32 %v381, %v381
  %v446 = vmul.f32 %v382, %v382
  %v447 = vmul.f32 %v383, %v383
  %v448 = vmul.f32 %v384, %v384
  %v449 = vmul.f32 %v385, %v385
  %v450 = vmul.f32 %v386, %v386
  %v451 = vmul.f32 %v387, %v387
  %v452 = vmul.f32 %v388, %v388
  %v453 = vmul.f32 %v389, %v389
  %v454 = vmul.f32 %v390, %v390
  %v455 = vmul.f32 %v391, %v391
  %v456 = vmul.f32 %v392, %v392
  %v457 = vmul.f32 %v393, %v393
  %v458 = vmul.f32 %v394, %v394
  %v459 = vmul.f32 %v395, %v395
  %v460 = vsel %vm75, %v396, 0.0
  %461 = vadd.xlane.f32.xlu0 %v460
  %v462 = vpop.xlane.xlu0 %461
  %v463 = vsel %vm75, %v397, 0.0
  %464 = vadd.xlane.f32.xlu0 %v463
  %v465 = vpop.xlane.xlu0 %464
  %v466 = vsel %vm75, %v398, 0.0
  %467 = vadd.xlane.f32.xlu0 %v466
  %v468 = vpop.xlane.xlu0 %467
  %v469 = vsel %vm75, %v399, 0.0
  %470 = vadd.xlane.f32.xlu0 %v469
  %v471 = vpop.xlane.xlu0 %470
  %v472 = vsel %vm75, %v400, 0.0
  %473 = vadd.xlane.f32.xlu0 %v472
  %v474 = vpop.xlane.xlu0 %473
  %v475 = vsel %vm75, %v401, 0.0
  %476 = vadd.xlane.f32.xlu0 %v475
  %v477 = vpop.xlane.xlu0 %476
  %v478 = vsel %vm75, %v402, 0.0
  %479 = vadd.xlane.f32.xlu0 %v478
  %v480 = vpop.xlane.xlu0 %479
  %v481 = vsel %vm75, %v403, 0.0
  %482 = vadd.xlane.f32.xlu0 %v481
  %v483 = vpop.xlane.xlu0 %482
  %v484 = vsel %vm75, %v404, 0.0
  %485 = vadd.xlane.f32.xlu0 %v484
  %v486 = vpop.xlane.xlu0 %485
  %v487 = vsel %vm75, %v405, 0.0
  %488 = vadd.xlane.f32.xlu0 %v487
  %v489 = vpop.xlane.xlu0 %488
  %v490 = vsel %vm75, %v406, 0.0
  %491 = vadd.xlane.f32.xlu0 %v490
  %v492 = vpop.xlane.xlu0 %491
  %v493 = vsel %vm75, %v407, 0.0
  %494 = vadd.xlane.f32.xlu0 %v493
  %v495 = vpop.xlane.xlu0 %494
  %v496 = vsel %vm75, %v408, 0.0
  %497 = vadd.xlane.f32.xlu0 %v496
  %v498 = vpop.xlane.xlu0 %497
  %v499 = vsel %vm75, %v409, 0.0
  %500 = vadd.xlane.f32.xlu0 %v499
  %v501 = vpop.xlane.xlu0 %500
  %v502 = vsel %vm75, %v410, 0.0
  %503 = vadd.xlane.f32.xlu0 %v502
  %v504 = vpop.xlane.xlu0 %503
  %v505 = vsel %vm75, %v411, 0.0
  %506 = vadd.xlane.f32.xlu0 %v505
  %v507 = vpop.xlane.xlu0 %506
  %v508 = vsel %vm75, %v412, 0.0
  %509 = vadd.xlane.f32.xlu0 %v508
  %v510 = vpop.xlane.xlu0 %509
  %v511 = vsel %vm75, %v413, 0.0
  %512 = vadd.xlane.f32.xlu0 %v511
  %v513 = vpop.xlane.xlu0 %512
  %v514 = vsel %vm75, %v414, 0.0
  %515 = vadd.xlane.f32.xlu0 %v514
  %v516 = vpop.xlane.xlu0 %515
  %v517 = vsel %vm75, %v415, 0.0
  %518 = vadd.xlane.f32.xlu0 %v517
  %v519 = vpop.xlane.xlu0 %518
  %v520 = vsel %vm75, %v416, 0.0
  %521 = vadd.xlane.f32.xlu0 %v520
  %v522 = vpop.xlane.xlu0 %521
  %v523 = vsel %vm75, %v417, 0.0
  %524 = vadd.xlane.f32.xlu0 %v523
  %v525 = vpop.xlane.xlu0 %524
  %v526 = vsel %vm75, %v418, 0.0
  %527 = vadd.xlane.f32.xlu0 %v526
  %v528 = vpop.xlane.xlu0 %527
  %v529 = vsel %vm75, %v419, 0.0
  %530 = vadd.xlane.f32.xlu0 %v529
  %v531 = vpop.xlane.xlu0 %530
  %v532 = vsel %vm75, %v420, 0.0
  %533 = vadd.xlane.f32.xlu0 %v532
  %v534 = vpop.xlane.xlu0 %533
  %v535 = vsel %vm75, %v421, 0.0
  %536 = vadd.xlane.f32.xlu0 %v535
  %v537 = vpop.xlane.xlu0 %536
  %v538 = vsel %vm75, %v422, 0.0
  %539 = vadd.xlane.f32.xlu0 %v538
  %v540 = vpop.xlane.xlu0 %539
  %v541 = vsel %vm75, %v423, 0.0
  %542 = vadd.xlane.f32.xlu0 %v541
  %v543 = vpop.xlane.xlu0 %542
  %v544 = vsel %vm75, %v424, 0.0
  %545 = vadd.xlane.f32.xlu0 %v544
  %v546 = vpop.xlane.xlu0 %545
  %v547 = vsel %vm75, %v425, 0.0
  %548 = vadd.xlane.f32.xlu0 %v547
  %v549 = vpop.xlane.xlu0 %548
  %v550 = vsel %vm75, %v426, 0.0
  %551 = vadd.xlane.f32.xlu0 %v550
  %v552 = vpop.xlane.xlu0 %551
  %v553 = vsel %vm75, %v427, 0.0
  %554 = vadd.xlane.f32.xlu0 %v553
  %v555 = vpop.xlane.xlu0 %554
  %v556 = vsel %vm75, %v428, 0.0
  %557 = vadd.xlane.f32.xlu0 %v556
  %v558 = vpop.xlane.xlu0 %557
  %v559 = vsel %vm75, %v429, 0.0
  %560 = vadd.xlane.f32.xlu0 %v559
  %v561 = vpop.xlane.xlu0 %560
  %v562 = vsel %vm75, %v430, 0.0
  %563 = vadd.xlane.f32.xlu0 %v562
  %v564 = vpop.xlane.xlu0 %563
  %v565 = vsel %vm75, %v431, 0.0
  %566 = vadd.xlane.f32.xlu0 %v565
  %v567 = vpop.xlane.xlu0 %566
  %v568 = vsel %vm75, %v432, 0.0
  %569 = vadd.xlane.f32.xlu0 %v568
  %v570 = vpop.xlane.xlu0 %569
  %v571 = vsel %vm75, %v433, 0.0
  %572 = vadd.xlane.f32.xlu0 %v571
  %v573 = vpop.xlane.xlu0 %572
  %v574 = vsel %vm75, %v434, 0.0
  %575 = vadd.xlane.f32.xlu0 %v574
  %v576 = vpop.xlane.xlu0 %575
  %v577 = vsel %vm75, %v435, 0.0
  %578 = vadd.xlane.f32.xlu0 %v577
  %v579 = vpop.xlane.xlu0 %578
  %v580 = vsel %vm75, %v436, 0.0
  %581 = vadd.xlane.f32.xlu0 %v580
  %v582 = vpop.xlane.xlu0 %581
  %v583 = vsel %vm75, %v437, 0.0
  %584 = vadd.xlane.f32.xlu0 %v583
  %v585 = vpop.xlane.xlu0 %584
  %v586 = vsel %vm75, %v438, 0.0
  %587 = vadd.xlane.f32.xlu0 %v586
  %v588 = vpop.xlane.xlu0 %587
  %v589 = vsel %vm75, %v439, 0.0
  %590 = vadd.xlane.f32.xlu0 %v589
  %v591 = vpop.xlane.xlu0 %590
  %v592 = vsel %vm75, %v440, 0.0
  %593 = vadd.xlane.f32.xlu0 %v592
  %v594 = vpop.xlane.xlu0 %593
  %v595 = vsel %vm75, %v441, 0.0
  %596 = vadd.xlane.f32.xlu0 %v595
  %v597 = vpop.xlane.xlu0 %596
  %v598 = vsel %vm75, %v442, 0.0
  %599 = vadd.xlane.f32.xlu0 %v598
  %v600 = vpop.xlane.xlu0 %599
  %v601 = vsel %vm75, %v443, 0.0
  %602 = vadd.xlane.f32.xlu0 %v601
  %v603 = vpop.xlane.xlu0 %602
  %v604 = vsel %vm75, %v444, 0.0
  %605 = vadd.xlane.f32.xlu0 %v604
  %v606 = vpop.xlane.xlu0 %605
  %v607 = vsel %vm75, %v445, 0.0
  %608 = vadd.xlane.f32.xlu0 %v607
  %v609 = vpop.xlane.xlu0 %608
  %v610 = vsel %vm75, %v446, 0.0
  %611 = vadd.xlane.f32.xlu0 %v610
  %v612 = vpop.xlane.xlu0 %611
  %v613 = vsel %vm75, %v447, 0.0
  %614 = vadd.xlane.f32.xlu0 %v613
  %v615 = vpop.xlane.xlu0 %614
  %v616 = vsel %vm75, %v448, 0.0
  %617 = vadd.xlane.f32.xlu0 %v616
  %v618 = vpop.xlane.xlu0 %617
  %v619 = vsel %vm75, %v449, 0.0
  %620 = vadd.xlane.f32.xlu0 %v619
  %v621 = vpop.xlane.xlu0 %620
  %v622 = vsel %vm75, %v450, 0.0
  %623 = vadd.xlane.f32.xlu0 %v622
  %v624 = vpop.xlane.xlu0 %623
  %v625 = vsel %vm75, %v451, 0.0
  %626 = vadd.xlane.f32.xlu0 %v625
  %v627 = vpop.xlane.xlu0 %626
  %v628 = vsel %vm75, %v452, 0.0
  %629 = vadd.xlane.f32.xlu0 %v628
  %v630 = vpop.xlane.xlu0 %629
  %v631 = vsel %vm75, %v453, 0.0
  %632 = vadd.xlane.f32.xlu0 %v631
  %v633 = vpop.xlane.xlu0 %632
  %v634 = vsel %vm75, %v454, 0.0
  %635 = vadd.xlane.f32.xlu0 %v634
  %v636 = vpop.xlane.xlu0 %635
  %v637 = vsel %vm75, %v455, 0.0
  %638 = vadd.xlane.f32.xlu0 %v637
  %v639 = vpop.xlane.xlu0 %638
  %v640 = vsel %vm75, %v456, 0.0
  %641 = vadd.xlane.f32.xlu0 %v640
  %v642 = vpop.xlane.xlu0 %641
  %v643 = vsel %vm75, %v457, 0.0
  %644 = vadd.xlane.f32.xlu0 %v643
  %v645 = vpop.xlane.xlu0 %644
  %v646 = vsel %vm75, %v458, 0.0
  %647 = vadd.xlane.f32.xlu0 %v646
  %v648 = vpop.xlane.xlu0 %647
  %v649 = vsel %vm75, %v459, 0.0
  %650 = vadd.xlane.f32.xlu0 %v649
  %v651 = vpop.xlane.xlu0 %650
  %v652 = vmul.f32 %v462, 0.03125
  %v653 = vmul.f32 %v465, 0.03125
  %v654 = vmul.f32 %v468, 0.03125
  %v655 = vmul.f32 %v471, 0.03125
  %v656 = vmul.f32 %v474, 0.03125
  %v657 = vmul.f32 %v477, 0.03125
  %v658 = vmul.f32 %v480, 0.03125
  %v659 = vmul.f32 %v483, 0.03125
  %v660 = vmul.f32 %v486, 0.03125
  %v661 = vmul.f32 %v489, 0.03125
  %v662 = vmul.f32 %v492, 0.03125
  %v663 = vmul.f32 %v495, 0.03125
  %v664 = vmul.f32 %v498, 0.03125
  %v665 = vmul.f32 %v501, 0.03125
  %v666 = vmul.f32 %v504, 0.03125
  %v667 = vmul.f32 %v507, 0.03125
  %v668 = vmul.f32 %v510, 0.03125
  %v669 = vmul.f32 %v513, 0.03125
  %v670 = vmul.f32 %v516, 0.03125
  %v671 = vmul.f32 %v519, 0.03125
  %v672 = vmul.f32 %v522, 0.03125
  %v673 = vmul.f32 %v525, 0.03125
  %v674 = vmul.f32 %v528, 0.03125
  %v675 = vmul.f32 %v531, 0.03125
  %v676 = vmul.f32 %v534, 0.03125
  %v677 = vmul.f32 %v537, 0.03125
  %v678 = vmul.f32 %v540, 0.03125
  %v679 = vmul.f32 %v543, 0.03125
  %v680 = vmul.f32 %v546, 0.03125
  %v681 = vmul.f32 %v549, 0.03125
  %v682 = vmul.f32 %v552, 0.03125
  %v683 = vmul.f32 %v555, 0.03125
  %v684 = vmul.f32 %v558, 0.03125
  %v685 = vmul.f32 %v561, 0.03125
  %v686 = vmul.f32 %v564, 0.03125
  %v687 = vmul.f32 %v567, 0.03125
  %v688 = vmul.f32 %v570, 0.03125
  %v689 = vmul.f32 %v573, 0.03125
  %v690 = vmul.f32 %v576, 0.03125
  %v691 = vmul.f32 %v579, 0.03125
  %v692 = vmul.f32 %v582, 0.03125
  %v693 = vmul.f32 %v585, 0.03125
  %v694 = vmul.f32 %v588, 0.03125
  %v695 = vmul.f32 %v591, 0.03125
  %v696 = vmul.f32 %v594, 0.03125
  %v697 = vmul.f32 %v597, 0.03125
  %v698 = vmul.f32 %v600, 0.03125
  %v699 = vmul.f32 %v603, 0.03125
  %v700 = vmul.f32 %v606, 0.03125
  %v701 = vmul.f32 %v609, 0.03125
  %v702 = vmul.f32 %v612, 0.03125
  %v703 = vmul.f32 %v615, 0.03125
  %v704 = vmul.f32 %v618, 0.03125
  %v705 = vmul.f32 %v621, 0.03125
  %v706 = vmul.f32 %v624, 0.03125
  %v707 = vmul.f32 %v627, 0.03125
  %v708 = vmul.f32 %v630, 0.03125
  %v709 = vmul.f32 %v633, 0.03125
  %v710 = vmul.f32 %v636, 0.03125
  %v711 = vmul.f32 %v639, 0.03125
  %v712 = vmul.f32 %v642, 0.03125
  %v713 = vmul.f32 %v645, 0.03125
  %v714 = vmul.f32 %v648, 0.03125
  %v715 = vmul.f32 %v651, 0.03125
  %v716 = vadd.f32 %v652, 1e-05
  %v717 = vadd.f32 %v653, 1e-05
  %v718 = vadd.f32 %v654, 1e-05
  %v719 = vadd.f32 %v655, 1e-05
  %v720 = vadd.f32 %v656, 1e-05
  %v721 = vadd.f32 %v657, 1e-05
  %v722 = vadd.f32 %v658, 1e-05
  %v723 = vadd.f32 %v659, 1e-05
  %v724 = vadd.f32 %v660, 1e-05
  %v725 = vadd.f32 %v661, 1e-05
  %v726 = vadd.f32 %v662, 1e-05
  %v727 = vadd.f32 %v663, 1e-05
  %v728 = vadd.f32 %v664, 1e-05
  %v729 = vadd.f32 %v665, 1e-05
  %v730 = vadd.f32 %v666, 1e-05
  %v731 = vadd.f32 %v667, 1e-05
  %v732 = vadd.f32 %v668, 1e-05
  %v733 = vadd.f32 %v669, 1e-05
  %v734 = vadd.f32 %v670, 1e-05
  %v735 = vadd.f32 %v671, 1e-05
  %v736 = vadd.f32 %v672, 1e-05
  %v737 = vadd.f32 %v673, 1e-05
  %v738 = vadd.f32 %v674, 1e-05
  %v739 = vadd.f32 %v675, 1e-05
  %v740 = vadd.f32 %v676, 1e-05
  %v741 = vadd.f32 %v677, 1e-05
  %v742 = vadd.f32 %v678, 1e-05
  %v743 = vadd.f32 %v679, 1e-05
  %v744 = vadd.f32 %v680, 1e-05
  %v745 = vadd.f32 %v681, 1e-05
  %v746 = vadd.f32 %v682, 1e-05
  %v747 = vadd.f32 %v683, 1e-05
  %v748 = vadd.f32 %v684, 1e-05
  %v749 = vadd.f32 %v685, 1e-05
  %v750 = vadd.f32 %v686, 1e-05
  %v751 = vadd.f32 %v687, 1e-05
  %v752 = vadd.f32 %v688, 1e-05
  %v753 = vadd.f32 %v689, 1e-05
  %v754 = vadd.f32 %v690, 1e-05
  %v755 = vadd.f32 %v691, 1e-05
  %v756 = vadd.f32 %v692, 1e-05
  %v757 = vadd.f32 %v693, 1e-05
  %v758 = vadd.f32 %v694, 1e-05
  %v759 = vadd.f32 %v695, 1e-05
  %v760 = vadd.f32 %v696, 1e-05
  %v761 = vadd.f32 %v697, 1e-05
  %v762 = vadd.f32 %v698, 1e-05
  %v763 = vadd.f32 %v699, 1e-05
  %v764 = vadd.f32 %v700, 1e-05
  %v765 = vadd.f32 %v701, 1e-05
  %v766 = vadd.f32 %v702, 1e-05
  %v767 = vadd.f32 %v703, 1e-05
  %v768 = vadd.f32 %v704, 1e-05
  %v769 = vadd.f32 %v705, 1e-05
  %v770 = vadd.f32 %v706, 1e-05
  %v771 = vadd.f32 %v707, 1e-05
  %v772 = vadd.f32 %v708, 1e-05
  %v773 = vadd.f32 %v709, 1e-05
  %v774 = vadd.f32 %v710, 1e-05
  %v775 = vadd.f32 %v711, 1e-05
  %v776 = vadd.f32 %v712, 1e-05
  %v777 = vadd.f32 %v713, 1e-05
  %v778 = vadd.f32 %v714, 1e-05
  %v779 = vadd.f32 %v715, 1e-05
  %v780 = vrsqrt.pop %v716
  %v781 = vrsqrt.pop %v717
  %v782 = vrsqrt.pop %v718
  %v783 = vrsqrt.pop %v719
  %v784 = vrsqrt.pop %v720
  %v785 = vrsqrt.pop %v721
  %v786 = vrsqrt.pop %v722
  %v787 = vrsqrt.pop %v723
  %v788 = vrsqrt.pop %v724
  %v789 = vrsqrt.pop %v725
  %v790 = vrsqrt.pop %v726
  %v791 = vrsqrt.pop %v727
  %v792 = vrsqrt.pop %v728
  %v793 = vrsqrt.pop %v729
  %v794 = vrsqrt.pop %v730
  %v795 = vrsqrt.pop %v731
  %v796 = vrsqrt.pop %v732
  %v797 = vrsqrt.pop %v733
  %v798 = vrsqrt.pop %v734
  %v799 = vrsqrt.pop %v735
  %v800 = vrsqrt.pop %v736
  %v801 = vrsqrt.pop %v737
  %v802 = vrsqrt.pop %v738
  %v803 = vrsqrt.pop %v739
  %v804 = vrsqrt.pop %v740
  %v805 = vrsqrt.pop %v741
  %v806 = vrsqrt.pop %v742
  %v807 = vrsqrt.pop %v743
  %v808 = vrsqrt.pop %v744
  %v809 = vrsqrt.pop %v745
  %v810 = vrsqrt.pop %v746
  %v811 = vrsqrt.pop %v747
  %v812 = vrsqrt.pop %v748
  %v813 = vrsqrt.pop %v749
  %v814 = vrsqrt.pop %v750
  %v815 = vrsqrt.pop %v751
  %v816 = vrsqrt.pop %v752
  %v817 = vrsqrt.pop %v753
  %v818 = vrsqrt.pop %v754
  %v819 = vrsqrt.pop %v755
  %v820 = vrsqrt.pop %v756
  %v821 = vrsqrt.pop %v757
  %v822 = vrsqrt.pop %v758
  %v823 = vrsqrt.pop %v759
  %v824 = vrsqrt.pop %v760
  %v825 = vrsqrt.pop %v761
  %v826 = vrsqrt.pop %v762
  %v827 = vrsqrt.pop %v763
  %v828 = vrsqrt.pop %v764
  %v829 = vrsqrt.pop %v765
  %v830 = vrsqrt.pop %v766
  %v831 = vrsqrt.pop %v767
  %v832 = vrsqrt.pop %v768
  %v833 = vrsqrt.pop %v769
  %v834 = vrsqrt.pop %v770
  %v835 = vrsqrt.pop %v771
  %v836 = vrsqrt.pop %v772
  %v837 = vrsqrt.pop %v773
  %v838 = vrsqrt.pop %v774
  %v839 = vrsqrt.pop %v775
  %v840 = vrsqrt.pop %v776
  %v841 = vrsqrt.pop %v777
  %v842 = vrsqrt.pop %v778
  %v843 = vrsqrt.pop %v779
  %v844 = vld [vmem:[%s1] sm:$0x1]
  %v845 = vmul.f32 %v11, %v780
  %v846 = vmul.f32 %v12, %v781
  %v847 = vmul.f32 %v13, %v782
  %v848 = vmul.f32 %v14, %v783
  %v849 = vmul.f32 %v15, %v784
  %v850 = vmul.f32 %v16, %v785
  %v851 = vmul.f32 %v17, %v786
  %v852 = vmul.f32 %v18, %v787
  %v853 = vmul.f32 %v19, %v788
  %v854 = vmul.f32 %v20, %v789
  %v855 = vmul.f32 %v21, %v790
  %v856 = vmul.f32 %v22, %v791
  %v857 = vmul.f32 %v23, %v792
  %v858 = vmul.f32 %v24, %v793
  %v859 = vmul.f32 %v25, %v794
  %v860 = vmul.f32 %v26, %v795
  %v861 = vmul.f32 %v27, %v796
  %v862 = vmul.f32 %v28, %v797
  %v863 = vmul.f32 %v29, %v798
  %v864 = vmul.f32 %v30, %v799
  %v865 = vmul.f32 %v31, %v800
  %v866 = vmul.f32 %v32, %v801
  %v867 = vmul.f32 %v33, %v802
  %v868 = vmul.f32 %v34, %v803
  %v869 = vmul.f32 %v35, %v804
  %v870 = vmul.f32 %v36, %v805
  %v871 = vmul.f32 %v37, %v806
  %v872 = vmul.f32 %v38, %v807
  %v873 = vmul.f32 %v39, %v808
  %v874 = vmul.f32 %v40, %v809
  %v875 = vmul.f32 %v41, %v810
  %v876 = vmul.f32 %v42, %v811
  %v877 = vmul.f32 %v43, %v812
  %v878 = vmul.f32 %v44, %v813
  %v879 = vmul.f32 %v45, %v814
  %v880 = vmul.f32 %v46, %v815
  %v881 = vmul.f32 %v47, %v816
  %v882 = vmul.f32 %v48, %v817
  %v883 = vmul.f32 %v49, %v818
  %v884 = vmul.f32 %v50, %v819
  %v885 = vmul.f32 %v51, %v820
  %v886 = vmul.f32 %v52, %v821
  %v887 = vmul.f32 %v53, %v822
  %v888 = vmul.f32 %v54, %v823
  %v889 = vmul.f32 %v55, %v824
  %v890 = vmul.f32 %v56, %v825
  %v891 = vmul.f32 %v57, %v826
  %v892 = vmul.f32 %v58, %v827
  %v893 = vmul.f32 %v59, %v828
  %v894 = vmul.f32 %v60, %v829
  %v895 = vmul.f32 %v61, %v830
  %v896 = vmul.f32 %v62, %v831
  %v897 = vmul.f32 %v63, %v832
  %v898 = vmul.f32 %v64, %v833
  %v899 = vmul.f32 %v65, %v834
  %v900 = vmul.f32 %v66, %v835
  %v901 = vmul.f32 %v67, %v836
  %v902 = vmul.f32 %v68, %v837
  %v903 = vmul.f32 %v69, %v838
  %v904 = vmul.f32 %v70, %v839
  %v905 = vmul.f32 %v71, %v840
  %v906 = vmul.f32 %v72, %v841
  %v907 = vmul.f32 %v73, %v842
  %v908 = vmul.f32 %v74, %v843
  %v910 = vlaneseq
  %v911 = vshrl.u32 %v910, 7
  %v912 = vsub.s32 0, %v911
  %v913 = vrot.slane %v844, %v912
  %v915 = vmul.f32 %v845, %v913
  %v916 = vmul.f32 %v846, %v913
  %v917 = vmul.f32 %v847, %v913
  %v918 = vmul.f32 %v848, %v913
  %v919 = vmul.f32 %v849, %v913
  %v920 = vmul.f32 %v850, %v913
  %v921 = vmul.f32 %v851, %v913
  %v922 = vmul.f32 %v852, %v913
  %v923 = vmul.f32 %v853, %v913
  %v924 = vmul.f32 %v854, %v913
  %v925 = vmul.f32 %v855, %v913
  %v926 = vmul.f32 %v856, %v913
  %v927 = vmul.f32 %v857, %v913
  %v928 = vmul.f32 %v858, %v913
  %v929 = vmul.f32 %v859, %v913
  %v930 = vmul.f32 %v860, %v913
  %v931 = vmul.f32 %v861, %v913
  %v932 = vmul.f32 %v862, %v913
  %v933 = vmul.f32 %v863, %v913
  %v934 = vmul.f32 %v864, %v913
  %v935 = vmul.f32 %v865, %v913
  %v936 = vmul.f32 %v866, %v913
  %v937 = vmul.f32 %v867, %v913
  %v938 = vmul.f32 %v868, %v913
  %v939 = vmul.f32 %v869, %v913
  %v940 = vmul.f32 %v870, %v913
  %v941 = vmul.f32 %v871, %v913
  %v942 = vmul.f32 %v872, %v913
  %v943 = vmul.f32 %v873, %v913
  %v944 = vmul.f32 %v874, %v913
  %v945 = vmul.f32 %v875, %v913
  %v946 = vmul.f32 %v876, %v913
  %v947 = vmul.f32 %v877, %v913
  %v948 = vmul.f32 %v878, %v913
  %v949 = vmul.f32 %v879, %v913
  %v950 = vmul.f32 %v880, %v913
  %v951 = vmul.f32 %v881, %v913
  %v952 = vmul.f32 %v882, %v913
  %v953 = vmul.f32 %v883, %v913
  %v954 = vmul.f32 %v884, %v913
  %v955 = vmul.f32 %v885, %v913
  %v956 = vmul.f32 %v886, %v913
  %v957 = vmul.f32 %v887, %v913
  %v958 = vmul.f32 %v888, %v913
  %v959 = vmul.f32 %v889, %v913
  %v960 = vmul.f32 %v890, %v913
  %v961 = vmul.f32 %v891, %v913
  %v962 = vmul.f32 %v892, %v913
  %v963 = vmul.f32 %v893, %v913
  %v964 = vmul.f32 %v894, %v913
  %v965 = vmul.f32 %v895, %v913
  %v966 = vmul.f32 %v896, %v913
  %v967 = vmul.f32 %v897, %v913
  %v968 = vmul.f32 %v898, %v913
  %v969 = vmul.f32 %v899, %v913
  %v970 = vmul.f32 %v900, %v913
  %v971 = vmul.f32 %v901, %v913
  %v972 = vmul.f32 %v902, %v913
  %v973 = vmul.f32 %v903, %v913
  %v974 = vmul.f32 %v904, %v913
  %v975 = vmul.f32 %v905, %v913
  %v976 = vmul.f32 %v906, %v913
  %v977 = vmul.f32 %v907, %v913
  %v978 = vmul.f32 %v908, %v913
  %979 = vst.msk [vmem:[%s2] sm:$0xff] %vm75, %v915
  %980 = vst.msk [vmem:[%s2 + $0x8] sm:$0xff] %vm75, %v916
  %981 = vst.msk [vmem:[%s2 + $0x10] sm:$0xff] %vm75, %v917
  %982 = vst.msk [vmem:[%s2 + $0x18] sm:$0xff] %vm75, %v918
  %983 = vst.msk [vmem:[%s2 + $0x20] sm:$0xff] %vm75, %v919
  %984 = vst.msk [vmem:[%s2 + $0x28] sm:$0xff] %vm75, %v920
  %985 = vst.msk [vmem:[%s2 + $0x30] sm:$0xff] %vm75, %v921
  %986 = vst.msk [vmem:[%s2 + $0x38] sm:$0xff] %vm75, %v922
  %987 = vst.msk [vmem:[%s2 + $0x40] sm:$0xff] %vm75, %v923
  %988 = vst.msk [vmem:[%s2 + $0x48] sm:$0xff] %vm75, %v924
  %989 = vst.msk [vmem:[%s2 + $0x50] sm:$0xff] %vm75, %v925
  %990 = vst.msk [vmem:[%s2 + $0x58] sm:$0xff] %vm75, %v926
  %991 = vst.msk [vmem:[%s2 + $0x60] sm:$0xff] %vm75, %v927
  %992 = vst.msk [vmem:[%s2 + $0x68] sm:$0xff] %vm75, %v928
  %993 = vst.msk [vmem:[%s2 + $0x70] sm:$0xff] %vm75, %v929
  %994 = vst.msk [vmem:[%s2 + $0x78] sm:$0xff] %vm75, %v930
  %995 = vst.msk [vmem:[%s2 + $0x80] sm:$0xff] %vm75, %v931
  %996 = vst.msk [vmem:[%s2 + $0x88] sm:$0xff] %vm75, %v932
  %997 = vst.msk [vmem:[%s2 + $0x90] sm:$0xff] %vm75, %v933
  %998 = vst.msk [vmem:[%s2 + $0x98] sm:$0xff] %vm75, %v934
  %999 = vst.msk [vmem:[%s2 + $0xa0] sm:$0xff] %vm75, %v935
  %1000 = vst.msk [vmem:[%s2 + $0xa8] sm:$0xff] %vm75, %v936
  %1001 = vst.msk [vmem:[%s2 + $0xb0] sm:$0xff] %vm75, %v937
  %1002 = vst.msk [vmem:[%s2 + $0xb8] sm:$0xff] %vm75, %v938
  %1003 = vst.msk [vmem:[%s2 + $0xc0] sm:$0xff] %vm75, %v939
  %1004 = vst.msk [vmem:[%s2 + $0xc8] sm:$0xff] %vm75, %v940
  %1005 = vst.msk [vmem:[%s2 + $0xd0] sm:$0xff] %vm75, %v941
  %1006 = vst.msk [vmem:[%s2 + $0xd8] sm:$0xff] %vm75, %v942
  %1007 = vst.msk [vmem:[%s2 + $0xe0] sm:$0xff] %vm75, %v943
  %1008 = vst.msk [vmem:[%s2 + $0xe8] sm:$0xff] %vm75, %v944
  %1009 = vst.msk [vmem:[%s2 + $0xf0] sm:$0xff] %vm75, %v945
  %1010 = vst.msk [vmem:[%s2 + $0xf8] sm:$0xff] %vm75, %v946
  %1011 = vst.msk [vmem:[%s2 + $0x100] sm:$0xff] %vm75, %v947
  %1012 = vst.msk [vmem:[%s2 + $0x108] sm:$0xff] %vm75, %v948
  %1013 = vst.msk [vmem:[%s2 + $0x110] sm:$0xff] %vm75, %v949
  %1014 = vst.msk [vmem:[%s2 + $0x118] sm:$0xff] %vm75, %v950
  %1015 = vst.msk [vmem:[%s2 + $0x120] sm:$0xff] %vm75, %v951
  %1016 = vst.msk [vmem:[%s2 + $0x128] sm:$0xff] %vm75, %v952
  %1017 = vst.msk [vmem:[%s2 + $0x130] sm:$0xff] %vm75, %v953
  %1018 = vst.msk [vmem:[%s2 + $0x138] sm:$0xff] %vm75, %v954
  %1019 = vst.msk [vmem:[%s2 + $0x140] sm:$0xff] %vm75, %v955
  %1020 = vst.msk [vmem:[%s2 + $0x148] sm:$0xff] %vm75, %v956
  %1021 = vst.msk [vmem:[%s2 + $0x150] sm:$0xff] %vm75, %v957
  %1022 = vst.msk [vmem:[%s2 + $0x158] sm:$0xff] %vm75, %v958
  %1023 = vst.msk [vmem:[%s2 + $0x160] sm:$0xff] %vm75, %v959
  %1024 = vst.msk [vmem:[%s2 + $0x168] sm:$0xff] %vm75, %v960
  %1025 = vst.msk [vmem:[%s2 + $0x170] sm:$0xff] %vm75, %v961
  %1026 = vst.msk [vmem:[%s2 + $0x178] sm:$0xff] %vm75, %v962
  %1027 = vst.msk [vmem:[%s2 + $0x180] sm:$0xff] %vm75, %v963
  %1028 = vst.msk [vmem:[%s2 + $0x188] sm:$0xff] %vm75, %v964
  %1029 = vst.msk [vmem:[%s2 + $0x190] sm:$0xff] %vm75, %v965
  %1030 = vst.msk [vmem:[%s2 + $0x198] sm:$0xff] %vm75, %v966
  %1031 = vst.msk [vmem:[%s2 + $0x1a0] sm:$0xff] %vm75, %v967
  %1032 = vst.msk [vmem:[%s2 + $0x1a8] sm:$0xff] %vm75, %v968
  %1033 = vst.msk [vmem:[%s2 + $0x1b0] sm:$0xff] %vm75, %v969
  %1034 = vst.msk [vmem:[%s2 + $0x1b8] sm:$0xff] %vm75, %v970
  %1035 = vst.msk [vmem:[%s2 + $0x1c0] sm:$0xff] %vm75, %v971
  %1036 = vst.msk [vmem:[%s2 + $0x1c8] sm:$0xff] %vm75, %v972
  %1037 = vst.msk [vmem:[%s2 + $0x1d0] sm:$0xff] %vm75, %v973
  %1038 = vst.msk [vmem:[%s2 + $0x1d8] sm:$0xff] %vm75, %v974
  %1039 = vst.msk [vmem:[%s2 + $0x1e0] sm:$0xff] %vm75, %v975
  %1040 = vst.msk [vmem:[%s2 + $0x1e8] sm:$0xff] %vm75, %v976
  %1041 = vst.msk [vmem:[%s2 + $0x1f0] sm:$0xff] %vm75, %v977
  %1042 = vst.msk [vmem:[%s2 + $0x1f8] sm:$0xff] %vm75, %v978
  // Predicated region
  $region10: #{tpu_custom_call.1} parent=0 // pred_check
    _
  $region11: #{tpu_custom_call.1} parent=0 // pred_check_branch
    %1044 = sbr.rel (0) target = $region13
  $region12: #{tpu_custom_call.1} parent=0 // pred_region
    _
  $region13: #{tpu_custom_call.1} parent=0 // pred_fallthru
    _
  // Predicated region
  $region14: #{tpu_custom_call.1} parent=0 // pred_check
    _
  $region15: #{tpu_custom_call.1} parent=0 // pred_check_branch
    %1046 = sbr.rel (0) target = $region17
  $region16: #{tpu_custom_call.1} parent=0 // pred_region
    _
  $region17: #{tpu_custom_call.1} parent=0 // pred_fallthru
    _

</llo_original>
